<compile_context>
chip_gen: v6e
topology: v6e:2x2x1
jax: 0.10.0
libtpu: 0.0.40
codegen_flags: <defaults>
</compile_context>

<pallas_src>
import functools

import jax
import jax.numpy as jnp
from jax.experimental import pallas as pl
from jax.experimental.pallas import tpu as pltpu

HEAD_PAD = 128  # lane-dense width for the fused (reg | arc | zero-pad) head


def rankup_kernel(x_ref, w1_ref, b1_ref, w2_ref, b2_ref, wh_ref, bh_ref,
                  *out_refs):
    """Fused 2-layer MLP backbone + single fused (reg|arc) head matmul.

    out_refs is (feat_ref, head_ref), or (head_ref,) on the head-only path.
    """
    emit_feat = len(out_refs) == 2
    head_ref = out_refs[-1]

    # backbone layer 1: bf16 operands, f32 accumulate, f32 bias + ReLU
    h1 = jnp.dot(x_ref[...], w1_ref[...], preferred_element_type=jnp.float32)
    h1 = jnp.maximum(h1 + b1_ref[...], 0.0)

    # backbone layer 2
    h2 = jnp.dot(h1.astype(jnp.bfloat16), w2_ref[...],
                 preferred_element_type=jnp.float32)
    feat = jnp.maximum(h2 + b2_ref[...], 0.0)
    feat_bf = feat.astype(jnp.bfloat16)
    if emit_feat:
        out_refs[0][...] = feat_bf                      # bf16 writeback

    # fused heads: one MXU push, lane-dense bf16 store
    head = jnp.dot(feat_bf, wh_ref[...], preferred_element_type=jnp.float32)
    head_ref[...] = (head + bh_ref[...]).astype(head_ref.dtype)


def _pick_tm(batch, tm_max):
    """Largest power-of-two tile (multiple of 128) <= tm_max that still leaves
    >= 2 grid tiles (v7x megacore) when the batch is big enough."""
    tm = 128
    while tm * 2 <= tm_max and batch >= tm * 4:
        tm *= 2
    return tm


def prepare_params(params):
    """One-time parameter prep (hoisted out of the per-forward wrapper):
    fuse reg/arc heads into one lane-padded weight/bias and cast all matmul
    operands to bf16."""
    w1, b1, w2, b2, wr, br, wa, ba = params
    hidden = w1.shape[1]
    out_dim = wr.shape[1]
    arc_dim = wa.shape[1]
    assert out_dim + arc_dim <= HEAD_PAD

    wh = (jnp.zeros((hidden, HEAD_PAD), jnp.float32)
          .at[:, :out_dim].set(wr)
          .at[:, out_dim:out_dim + arc_dim].set(wa))
    bh = (jnp.zeros((1, HEAD_PAD), jnp.float32)
          .at[:, :out_dim].set(br)
          .at[:, out_dim:out_dim + arc_dim].set(ba))

    prep = (w1.astype(jnp.bfloat16), b1,
            w2.astype(jnp.bfloat16), b2,
            wh.astype(jnp.bfloat16), bh)
    return jax.block_until_ready(prep)


@functools.partial(jax.jit,
                   static_argnames=("out_dim", "arc_dim", "tm_max",
                                    "return_feat"))
def rankup_forward(x, prep, *, out_dim, arc_dim=2, tm_max=1024,
                   return_feat=True):
    """Jitted forward. `prep` comes from prepare_params() (no per-call weight
    work).  Returns (feat, y_pred, arc_logits) or (y_pred, arc_logits)."""
    w1, b1, w2, b2, wh, bh = prep
    batch, in_dim = x.shape
    hidden = w1.shape[1]

    tm = _pick_tm(batch, tm_max)
    n_tiles = pl.cdiv(batch, tm)
    padded = n_tiles * tm

    x_bf = x.astype(jnp.bfloat16)
    if padded != batch:
        x_bf = jnp.pad(x_bf, ((0, padded - batch), (0, 0)))

    def const_spec(shape):
        return pl.BlockSpec(shape, lambda i: (0, 0))  # VMEM-resident weights

    in_specs = [
        pl.BlockSpec((tm, in_dim), lambda i: (i, 0)),   # x: streamed per tile
        const_spec((in_dim, hidden)),                   # w1
        const_spec((1, hidden)),                        # b1
        const_spec((hidden, hidden)),                   # w2
        const_spec((1, hidden)),                        # b2
        const_spec((hidden, HEAD_PAD)),                 # fused head weight
        const_spec((1, HEAD_PAD)),                      # fused head bias
    ]

    head_shape = jax.ShapeDtypeStruct((padded, HEAD_PAD), jnp.bfloat16)
    head_spec = pl.BlockSpec((tm, HEAD_PAD), lambda i: (i, 0))
    if return_feat:
        out_shape = (jax.ShapeDtypeStruct((padded, hidden), jnp.bfloat16),
                     head_shape)
        out_specs = (pl.BlockSpec((tm, hidden), lambda i: (i, 0)), head_spec)
    else:
        out_shape = head_shape
        out_specs = head_spec

    flops = 2 * padded * (in_dim * hidden + hidden * hidden
                          + hidden * HEAD_PAD)
    out_bytes = padded * ((hidden if return_feat else 0) + HEAD_PAD) * 2
    bytes_accessed = (x_bf.size * 2
                      + (w1.size + w2.size + wh.size) * 2
                      + (b1.size + b2.size + bh.size) * 4
                      + out_bytes)

    outs = pl.pallas_call(
        rankup_kernel,
        out_shape=out_shape,
        grid=(n_tiles,),
        in_specs=in_specs,
        out_specs=out_specs,
        compiler_params=pltpu.CompilerParams(
            dimension_semantics=("parallel",),          # megacore-shardable
        ),
        cost_estimate=pl.CostEstimate(
            flops=flops, transcendentals=0, bytes_accessed=bytes_accessed),
    )(x_bf, w1, b1, w2, b2, wh, bh)

    if return_feat:
        feat, head = outs
    else:
        feat, head = None, outs

    head = head[:batch]
    y_pred = head[:, :out_dim]
    arc_logits = head[:, out_dim:out_dim + arc_dim]
    if return_feat:
        return feat[:batch], y_pred, arc_logits
    return y_pred, arc_logits


def init_params(key, in_dim, hidden, out_dim):
    """nn.Linear-style Kaiming-uniform init; weights stored (fan_in, fan_out)."""
    def linear(k, fan_in, fan_out):
        k_w, k_b = jax.random.split(k)
        bound = 1.0 / jnp.sqrt(fan_in)
        w = jax.random.uniform(k_w, (fan_in, fan_out), jnp.float32, -bound, bound)
        b = jax.random.uniform(k_b, (1, fan_out), jnp.float32, -bound, bound)
        return w, b

    k1, k2, k3, k4 = jax.random.split(key, 4)
    w1, b1 = linear(k1, in_dim, hidden)
    w2, b2 = linear(k2, hidden, hidden)
    wr, br = linear(k3, hidden, out_dim)   # reg_head
    wa, ba = linear(k4, hidden, 2)         # arc_head (binary logits)
    return (w1, b1, w2, b2, wr, br, wa, ba)


def reference_forward(x, params):
    """Pure-JAX f32 reference of the PyTorch forward."""
    w1, b1, w2, b2, wr, br, wa, ba = params
    feat = jnp.maximum(x @ w1 + b1, 0.0)
    feat = jnp.maximum(feat @ w2 + b2, 0.0)
    return feat, feat @ wr + br, feat @ wa + ba


if __name__ == "__main__":
    # Small but MXU/lane-friendly shapes: 128 hidden lanes, batch = 4 x 128.
    batch, in_dim, hidden, out_dim = 512, 32, 128, 8

    key = jax.random.PRNGKey(0)
    k_x, k_p = jax.random.split(key)
    x = jax.random.normal(k_x, (batch, in_dim), jnp.float32)
    params = init_params(k_p, in_dim, hidden, out_dim)
    prep = prepare_params(params)          # one-time: head fusion + bf16 casts

    feat, y_pred, arc_logits = rankup_forward(x, prep, out_dim=out_dim,
                                              arc_dim=2)
    jax.block_until_ready((feat, y_pred, arc_logits))

    # head-only fast path (no feat writeback)
    y2, a2 = rankup_forward(x, prep, out_dim=out_dim, arc_dim=2,
                            return_feat=False)
    jax.block_until_ready((y2, a2))

    # correctness vs f32 reference (bf16 operands + bf16 writeback -> relaxed tol)
    feat_r, y_r, arc_r = reference_forward(x, params)
    assert feat.shape == (batch, hidden) and feat.dtype == jnp.bfloat16
    assert y_pred.shape == (batch, out_dim)
    assert arc_logits.shape == (batch, 2)
    assert y2.shape == (batch, out_dim) and a2.shape == (batch, 2)
    tol = dict(atol=7.5e-2, rtol=7.5e-2)
    assert jnp.allclose(feat.astype(jnp.float32), feat_r, **tol)
    assert jnp.allclose(y_pred.astype(jnp.float32), y_r, **tol)
    assert jnp.allclose(arc_logits.astype(jnp.float32), arc_r, **tol)
    assert jnp.allclose(y2.astype(jnp.float32), y_r, **tol)
    assert jnp.allclose(a2.astype(jnp.float32), arc_r, **tol)

    print("KERNEL_OK")
</pallas_src>

<mosaic_0001>
module attributes {stable_mosaic.version = 11 : i64} {
  func.func @rankup_kernel(%arg0: i32, %arg1: memref<256x32xbf16, #tpu.memory_space<vmem>>, %arg2: memref<32x128xbf16, #tpu.memory_space<vmem>>, %arg3: memref<1x128xf32, #tpu.memory_space<vmem>>, %arg4: memref<128x128xbf16, #tpu.memory_space<vmem>>, %arg5: memref<1x128xf32, #tpu.memory_space<vmem>>, %arg6: memref<128x128xbf16, #tpu.memory_space<vmem>>, %arg7: memref<1x128xf32, #tpu.memory_space<vmem>>, %arg8: memref<256x128xbf16, #tpu.memory_space<vmem>>, %arg9: memref<256x128xbf16, #tpu.memory_space<vmem>>) attributes {dimension_semantics = [#tpu.dimension_semantics<parallel>], iteration_bounds = array<i64: 2>, scalar_prefetch = 0 : i64, scratch_operands = 0 : i64, tpu.core_type = #tpu.core_type<tc>, window_params = [{transform_indices = @transform_0, window_bounds = array<i64: 256, 32>}, {pipeline_mode = #tpu.pipeline_mode<synchronous>, transform_indices = @transform_1, window_bounds = array<i64: 32, 128>}, {pipeline_mode = #tpu.pipeline_mode<synchronous>, transform_indices = @transform_2, window_bounds = array<i64: 1, 128>}, {pipeline_mode = #tpu.pipeline_mode<synchronous>, transform_indices = @transform_3, window_bounds = array<i64: 128, 128>}, {pipeline_mode = #tpu.pipeline_mode<synchronous>, transform_indices = @transform_4, window_bounds = array<i64: 1, 128>}, {pipeline_mode = #tpu.pipeline_mode<synchronous>, transform_indices = @transform_5, window_bounds = array<i64: 128, 128>}, {pipeline_mode = #tpu.pipeline_mode<synchronous>, transform_indices = @transform_6, window_bounds = array<i64: 1, 128>}, {transform_indices = @transform_7, window_bounds = array<i64: 256, 128>}, {transform_indices = @transform_8, window_bounds = array<i64: 256, 128>}]} {
    %c0 = arith.constant 0 : index
    %c0_0 = arith.constant 0 : index
    %0 = vector.load %arg1[%c0, %c0_0] : memref<256x32xbf16, #tpu.memory_space<vmem>>, vector<256x32xbf16>
    %c0_1 = arith.constant 0 : index
    %c0_2 = arith.constant 0 : index
    %1 = vector.load %arg2[%c0_1, %c0_2] : memref<32x128xbf16, #tpu.memory_space<vmem>>, vector<32x128xbf16>
    %cst = arith.constant dense<0.000000e+00> : vector<256x128xf32>
    %2 = tpu.matmul %0, %1, %cst {dimension_numbers = #tpu.dot_dimension_numbers<[1], [0], [0], [1], [0, 0, 1, 1], [], []>} : vector<256x32xbf16>, vector<32x128xbf16>, vector<256x128xf32> -> vector<256x128xf32>
    %c0_3 = arith.constant 0 : index
    %c0_4 = arith.constant 0 : index
    %3 = vector.load %arg3[%c0_3, %c0_4] : memref<1x128xf32, #tpu.memory_space<vmem>>, vector<1x128xf32>
    %4 = vector.broadcast %3 : vector<1x128xf32> to vector<256x128xf32>
    %5 = arith.addf %2, %4 : vector<256x128xf32>
    %cst_5 = arith.constant 0.000000e+00 : f32
    %6 = vector.broadcast %cst_5 : f32 to vector<256x128xf32>
    %7 = arith.maximumf %5, %6 : vector<256x128xf32>
    %8 = arith.truncf %7 : vector<256x128xf32> to vector<256x128xbf16>
    %c0_6 = arith.constant 0 : index
    %c0_7 = arith.constant 0 : index
    %9 = vector.load %arg4[%c0_6, %c0_7] : memref<128x128xbf16, #tpu.memory_space<vmem>>, vector<128x128xbf16>
    %cst_8 = arith.constant dense<0.000000e+00> : vector<256x128xf32>
    %10 = tpu.matmul %8, %9, %cst_8 {dimension_numbers = #tpu.dot_dimension_numbers<[1], [0], [0], [1], [0, 0, 1, 1], [], []>} : vector<256x128xbf16>, vector<128x128xbf16>, vector<256x128xf32> -> vector<256x128xf32>
    %c0_9 = arith.constant 0 : index
    %c0_10 = arith.constant 0 : index
    %11 = vector.load %arg5[%c0_9, %c0_10] : memref<1x128xf32, #tpu.memory_space<vmem>>, vector<1x128xf32>
    %12 = vector.broadcast %11 : vector<1x128xf32> to vector<256x128xf32>
    %13 = arith.addf %10, %12 : vector<256x128xf32>
    %cst_11 = arith.constant 0.000000e+00 : f32
    %14 = vector.broadcast %cst_11 : f32 to vector<256x128xf32>
    %15 = arith.maximumf %13, %14 : vector<256x128xf32>
    %16 = arith.truncf %15 : vector<256x128xf32> to vector<256x128xbf16>
    %c0_12 = arith.constant 0 : index
    %c0_13 = arith.constant 0 : index
    %17 = vector.load %arg8[%c0_12, %c0_13] : memref<256x128xbf16, #tpu.memory_space<vmem>>, vector<256x128xbf16>
    tpu.vector_store %arg8[%c0_12, %c0_13], %16 {strides = array<i32>} : memref<256x128xbf16, #tpu.memory_space<vmem>>, vector<256x128xbf16>,
    %c0_14 = arith.constant 0 : index
    %c0_15 = arith.constant 0 : index
    %18 = vector.load %arg6[%c0_14, %c0_15] : memref<128x128xbf16, #tpu.memory_space<vmem>>, vector<128x128xbf16>
    %cst_16 = arith.constant dense<0.000000e+00> : vector<256x128xf32>
    %19 = tpu.matmul %16, %18, %cst_16 {dimension_numbers = #tpu.dot_dimension_numbers<[1], [0], [0], [1], [0, 0, 1, 1], [], []>} : vector<256x128xbf16>, vector<128x128xbf16>, vector<256x128xf32> -> vector<256x128xf32>
    %c0_17 = arith.constant 0 : index
    %c0_18 = arith.constant 0 : index
    %20 = vector.load %arg7[%c0_17, %c0_18] : memref<1x128xf32, #tpu.memory_space<vmem>>, vector<1x128xf32>
    %21 = vector.broadcast %20 : vector<1x128xf32> to vector<256x128xf32>
    %22 = arith.addf %19, %21 : vector<256x128xf32>
    %23 = arith.truncf %22 : vector<256x128xf32> to vector<256x128xbf16>
    %c0_19 = arith.constant 0 : index
    %c0_20 = arith.constant 0 : index
    %24 = vector.load %arg9[%c0_19, %c0_20] : memref<256x128xbf16, #tpu.memory_space<vmem>>, vector<256x128xbf16>
    tpu.vector_store %arg9[%c0_19, %c0_20], %23 {strides = array<i32>} : memref<256x128xbf16, #tpu.memory_space<vmem>>, vector<256x128xbf16>,
    return
  }
  func.func @transform_0(%arg0: i32) -> (i32, i32) {
    %c0_i32 = arith.constant 0 : i32
    %c0_i32_0 = arith.constant 0 : i32
    return %arg0, %c0_i32 : i32, i32
  }
  func.func @transform_1(%arg0: i32) -> (i32, i32) {
    %c0_i32 = arith.constant 0 : i32
    %c0_i32_0 = arith.constant 0 : i32
    %c0_i32_1 = arith.constant 0 : i32
    return %c0_i32, %c0_i32_0 : i32, i32
  }
  func.func @transform_2(%arg0: i32) -> (i32, i32) {
    %c0_i32 = arith.constant 0 : i32
    %c0_i32_0 = arith.constant 0 : i32
    %c0_i32_1 = arith.constant 0 : i32
    return %c0_i32, %c0_i32_0 : i32, i32
  }
  func.func @transform_3(%arg0: i32) -> (i32, i32) {
    %c0_i32 = arith.constant 0 : i32
    %c0_i32_0 = arith.constant 0 : i32
    %c0_i32_1 = arith.constant 0 : i32
    return %c0_i32, %c0_i32_0 : i32, i32
  }
  func.func @transform_4(%arg0: i32) -> (i32, i32) {
    %c0_i32 = arith.constant 0 : i32
    %c0_i32_0 = arith.constant 0 : i32
    %c0_i32_1 = arith.constant 0 : i32
    return %c0_i32, %c0_i32_0 : i32, i32
  }
  func.func @transform_5(%arg0: i32) -> (i32, i32) {
    %c0_i32 = arith.constant 0 : i32
    %c0_i32_0 = arith.constant 0 : i32
    %c0_i32_1 = arith.constant 0 : i32
    return %c0_i32, %c0_i32_0 : i32, i32
  }
  func.func @transform_6(%arg0: i32) -> (i32, i32) {
    %c0_i32 = arith.constant 0 : i32
    %c0_i32_0 = arith.constant 0 : i32
    %c0_i32_1 = arith.constant 0 : i32
    return %c0_i32, %c0_i32_0 : i32, i32
  }
  func.func @transform_7(%arg0: i32) -> (i32, i32) {
    %c0_i32 = arith.constant 0 : i32
    %c0_i32_0 = arith.constant 0 : i32
    return %arg0, %c0_i32 : i32, i32
  }
  func.func @transform_8(%arg0: i32) -> (i32, i32) {
    %c0_i32 = arith.constant 0 : i32
    %c0_i32_0 = arith.constant 0 : i32
    return %arg0, %c0_i32 : i32, i32
  }
}

</mosaic_0001>

<llo_original>
// kernel: rankup_forward.1
$region0: #{rankup_forward.1}
  #allocation0 [shape = 'u32[]', space=smem, size = 0x4, offset = 0x4, fixed_abs, tag = 'smem constant byte address 0x4 - core index']
  #allocation1 [shape = 'u32[144,128]{1,0:T(1,128)}', space=vmem, size = 0x12000, scoped, tag = 'internal scratch']
  %s0 = inlined_call_operand.vmem [shape: bf16[512,32], index: 0, kind: input, shape index: {}]
  %s1 = inlined_call_operand.vmem [shape: bf16[32,128], index: 1, kind: input, shape index: {}]
  %s2 = inlined_call_operand.vmem [shape: f32[1,128], index: 2, kind: input, shape index: {}]
  %s3 = inlined_call_operand.vmem [shape: bf16[128,128], index: 3, kind: input, shape index: {}]
  %s4 = inlined_call_operand.vmem [shape: f32[1,128], index: 4, kind: input, shape index: {}]
  %s5 = inlined_call_operand.vmem [shape: bf16[128,128], index: 5, kind: input, shape index: {}]
  %s6 = inlined_call_operand.vmem [shape: f32[1,128], index: 6, kind: input, shape index: {}]
  %s7 = inlined_call_operand.hbm [shape: bf16[512,128], index: 7, kind: output, shape index: {0}]
  %s8 = inlined_call_operand.vmem [shape: bf16[512,128], index: 8, kind: output, shape index: {1}]
  %9 = xla_tuple %s7, %s8
  %s10 = sld [smem:[#allocation0]]
  $region69: #{rankup_forward.1} parent=0
    _
  %s12 = ssub.s32 1, %s10
  %s13 = scalar_select 0, %s12, %s10
  $region1: #{rankup_forward.1} parent=0
    #allocation2 [shape = 'u8[131072]{0}', space=vmem, size = 0x20000, scoped, tag = 'output window, operand 0']
    #allocation3 [shape = 's32[2]{0}', space=sflag, size = 0x8, scoped, tag = 'scoped memory for rankup_forward.1']
    %14 = vsyncpa [#allocation3], 0
    %s15 = scalar_lea.sflag [#allocation3], 1
    %16 = vsyncpa %s15, 0
    loop: start=0, step=1, limit=4
    $region2: #{rankup_forward.1} parent=1 // loop_pre_header
      _
    $region3: #{rankup_forward.1} parent=1 // loop_header
      %s18 = sphi 0, %s22
      %p19 = scmp.ge.s32.totalorder %s18, 4
      %s28 = sphi 0, %s30
      %s31 = sphi 0, %s28
      %s32 = sphi 0, %s31
      %s48 = sphi 0, %s32
      %s52 = sphi 0, %s52
      %s54 = sphi 0, %s52
      %s55 = sphi 0, %s54
      %s69 = sphi 0, %s55
      %s73 = sphi 0, %s73
      %s75 = sphi 0, %s73
      %s76 = sphi 0, %s75
      %s90 = sphi 0, %s76
      %s94 = sphi 0, %s94
      %s96 = sphi 0, %s94
      %s97 = sphi 0, %s96
      %s111 = sphi 0, %s97
      %s115 = sphi 0, %s115
      %s117 = sphi 0, %s115
      %s118 = sphi 0, %s117
      %s132 = sphi 0, %s118
      %s136 = sphi 0, %s136
      %s138 = sphi 0, %s136
      %s139 = sphi 0, %s138
      %s153 = sphi 0, %s139
      %s157 = sphi 0, %s157
      %s159 = sphi 0, %s157
      %s160 = sphi 0, %s159
      %s174 = sphi 0, %s160
      %s180 = sphi 0, %s182
      %s183 = sphi 0, %s180
      %s184 = sphi 0, %s183
      %s200 = sphi 0, %s184
      %s206 = sphi 0, %s208
      %s209 = sphi 0, %s206
      %s210 = sphi 0, %s209
      %s226 = sphi 0, %s210
    $region4: #{rankup_forward.1} parent=1 // loop_header_branch
      %21 = sbr.rel (%p19) target = $region8
    $region5: #{rankup_forward.1} parent=1 // loop_body
      %s23 = ssub.s32 %s18, 1
      %s24 = ssub.s32 %s18, 2
      %s25 = sadd.s32 %s18, 1
      %s26 = ssub.s32 %s18, %s25
      %p27 = scmp.eq.s32.totalorder %s26, 0
      %s29 = sadd.s32 %s28, 1
      %s30 = scalar_select %p27, %s28, %s29
      %p33 = pneg %p27
      %p34 = scmp.eq.s32.totalorder %s18, 1
      %p35 = por %p33, %p34
      %p36 = scmp.ne.s32.totalorder %s28, %s31
      %p37 = scmp.eq.s32.totalorder %s18, 0
      %p38 = por %p36, %p37
      %p39 = scmp.ne.s32.totalorder %s28, %s31
      %p40 = scmp.eq.s32.totalorder %s23, 1
      %p41 = por %p39, %p40
      %p42 = scmp.ne.s32.totalorder %s31, %s32
      %p43 = scmp.eq.s32.totalorder %s23, 0
      %p44 = por %p42, %p43
      %p45 = scmp.ne.s32.totalorder %s31, %s32
      %p46 = scmp.eq.s32.totalorder %s24, 1
      %p47 = por %p45, %p46
      %p49 = scmp.ne.s32.totalorder %s32, %s48
      %p50 = scmp.eq.s32.totalorder %s24, 0
      %p51 = por %p49, %p50
      %s53 = sadd.s32 %s52, 1
      %p56 = scmp.eq.s32.totalorder %s18, 1
      %p57 = scmp.ne.s32.totalorder %s52, %s54
      %p58 = scmp.eq.s32.totalorder %s18, 0
      %p59 = por %p57, %p58
      %p60 = scmp.ne.s32.totalorder %s52, %s54
      %p61 = scmp.eq.s32.totalorder %s23, 1
      %p62 = por %p60, %p61
      %p63 = scmp.ne.s32.totalorder %s54, %s55
      %p64 = scmp.eq.s32.totalorder %s23, 0
      %p65 = por %p63, %p64
      %p66 = scmp.ne.s32.totalorder %s54, %s55
      %p67 = scmp.eq.s32.totalorder %s24, 1
      %p68 = por %p66, %p67
      %p70 = scmp.ne.s32.totalorder %s55, %s69
      %p71 = scmp.eq.s32.totalorder %s24, 0
      %p72 = por %p70, %p71
      %s74 = sadd.s32 %s73, 1
      %p77 = scmp.eq.s32.totalorder %s18, 1
      %p78 = scmp.ne.s32.totalorder %s73, %s75
      %p79 = scmp.eq.s32.totalorder %s18, 0
      %p80 = por %p78, %p79
      %p81 = scmp.ne.s32.totalorder %s73, %s75
      %p82 = scmp.eq.s32.totalorder %s23, 1
      %p83 = por %p81, %p82
      %p84 = scmp.ne.s32.totalorder %s75, %s76
      %p85 = scmp.eq.s32.totalorder %s23, 0
      %p86 = por %p84, %p85
      %p87 = scmp.ne.s32.totalorder %s75, %s76
      %p88 = scmp.eq.s32.totalorder %s24, 1
      %p89 = por %p87, %p88
      %p91 = scmp.ne.s32.totalorder %s76, %s90
      %p92 = scmp.eq.s32.totalorder %s24, 0
      %p93 = por %p91, %p92
      %s95 = sadd.s32 %s94, 1
      %p98 = scmp.eq.s32.totalorder %s18, 1
      %p99 = scmp.ne.s32.totalorder %s94, %s96
      %p100 = scmp.eq.s32.totalorder %s18, 0
      %p101 = por %p99, %p100
      %p102 = scmp.ne.s32.totalorder %s94, %s96
      %p103 = scmp.eq.s32.totalorder %s23, 1
      %p104 = por %p102, %p103
      %p105 = scmp.ne.s32.totalorder %s96, %s97
      %p106 = scmp.eq.s32.totalorder %s23, 0
      %p107 = por %p105, %p106
      %p108 = scmp.ne.s32.totalorder %s96, %s97
      %p109 = scmp.eq.s32.totalorder %s24, 1
      %p110 = por %p108, %p109
      %p112 = scmp.ne.s32.totalorder %s97, %s111
      %p113 = scmp.eq.s32.totalorder %s24, 0
      %p114 = por %p112, %p113
      %s116 = sadd.s32 %s115, 1
      %p119 = scmp.eq.s32.totalorder %s18, 1
      %p120 = scmp.ne.s32.totalorder %s115, %s117
      %p121 = scmp.eq.s32.totalorder %s18, 0
      %p122 = por %p120, %p121
      %p123 = scmp.ne.s32.totalorder %s115, %s117
      %p124 = scmp.eq.s32.totalorder %s23, 1
      %p125 = por %p123, %p124
      %p126 = scmp.ne.s32.totalorder %s117, %s118
      %p127 = scmp.eq.s32.totalorder %s23, 0
      %p128 = por %p126, %p127
      %p129 = scmp.ne.s32.totalorder %s117, %s118
      %p130 = scmp.eq.s32.totalorder %s24, 1
      %p131 = por %p129, %p130
      %p133 = scmp.ne.s32.totalorder %s118, %s132
      %p134 = scmp.eq.s32.totalorder %s24, 0
      %p135 = por %p133, %p134
      %s137 = sadd.s32 %s136, 1
      %p140 = scmp.eq.s32.totalorder %s18, 1
      %p141 = scmp.ne.s32.totalorder %s136, %s138
      %p142 = scmp.eq.s32.totalorder %s18, 0
      %p143 = por %p141, %p142
      %p144 = scmp.ne.s32.totalorder %s136, %s138
      %p145 = scmp.eq.s32.totalorder %s23, 1
      %p146 = por %p144, %p145
      %p147 = scmp.ne.s32.totalorder %s138, %s139
      %p148 = scmp.eq.s32.totalorder %s23, 0
      %p149 = por %p147, %p148
      %p150 = scmp.ne.s32.totalorder %s138, %s139
      %p151 = scmp.eq.s32.totalorder %s24, 1
      %p152 = por %p150, %p151
      %p154 = scmp.ne.s32.totalorder %s139, %s153
      %p155 = scmp.eq.s32.totalorder %s24, 0
      %p156 = por %p154, %p155
      %s158 = sadd.s32 %s157, 1
      %p161 = scmp.eq.s32.totalorder %s18, 1
      %p162 = scmp.ne.s32.totalorder %s157, %s159
      %p163 = scmp.eq.s32.totalorder %s18, 0
      %p164 = por %p162, %p163
      %p165 = scmp.ne.s32.totalorder %s157, %s159
      %p166 = scmp.eq.s32.totalorder %s23, 1
      %p167 = por %p165, %p166
      %p168 = scmp.ne.s32.totalorder %s159, %s160
      %p169 = scmp.eq.s32.totalorder %s23, 0
      %p170 = por %p168, %p169
      %p171 = scmp.ne.s32.totalorder %s159, %s160
      %p172 = scmp.eq.s32.totalorder %s24, 1
      %p173 = por %p171, %p172
      %p175 = scmp.ne.s32.totalorder %s160, %s174
      %p176 = scmp.eq.s32.totalorder %s24, 0
      %p177 = por %p175, %p176
      %s178 = ssub.s32 %s18, %s25
      %p179 = scmp.eq.s32.totalorder %s178, 0
      %s181 = sadd.s32 %s180, 1
      %s182 = scalar_select %p179, %s180, %s181
      %p185 = pneg %p179
      %p186 = scmp.eq.s32.totalorder %s18, 1
      %p187 = por %p185, %p186
      %p188 = scmp.ne.s32.totalorder %s180, %s183
      %p189 = scmp.eq.s32.totalorder %s18, 0
      %p190 = por %p188, %p189
      %p191 = scmp.ne.s32.totalorder %s180, %s183
      %p192 = scmp.eq.s32.totalorder %s23, 1
      %p193 = por %p191, %p192
      %p194 = scmp.ne.s32.totalorder %s183, %s184
      %p195 = scmp.eq.s32.totalorder %s23, 0
      %p196 = por %p194, %p195
      %p197 = scmp.ne.s32.totalorder %s183, %s184
      %p198 = scmp.eq.s32.totalorder %s24, 1
      %p199 = por %p197, %p198
      %p201 = scmp.ne.s32.totalorder %s184, %s200
      %p202 = scmp.eq.s32.totalorder %s24, 0
      %p203 = por %p201, %p202
      %s204 = ssub.s32 %s18, %s25
      %p205 = scmp.eq.s32.totalorder %s204, 0
      %s207 = sadd.s32 %s206, 1
      %s208 = scalar_select %p205, %s206, %s207
      %p211 = pneg %p205
      %p212 = scmp.eq.s32.totalorder %s18, 1
      %p213 = por %p211, %p212
      %p214 = scmp.ne.s32.totalorder %s206, %s209
      %p215 = scmp.eq.s32.totalorder %s18, 0
      %p216 = por %p214, %p215
      %p217 = scmp.ne.s32.totalorder %s206, %s209
      %p218 = scmp.eq.s32.totalorder %s23, 1
      %p219 = por %p217, %p218
      %p220 = scmp.ne.s32.totalorder %s209, %s210
      %p221 = scmp.eq.s32.totalorder %s23, 0
      %p222 = por %p220, %p221
      %p223 = scmp.ne.s32.totalorder %s209, %s210
      %p224 = scmp.eq.s32.totalorder %s24, 1
      %p225 = por %p223, %p224
      %p227 = scmp.ne.s32.totalorder %s210, %s226
      %p228 = scmp.eq.s32.totalorder %s24, 0
      %p229 = por %p227, %p228
      %p230 = scmp.le.s32.totalorder 1, %s18
      %p231 = scmp.lt.s32.totalorder %s18, 3
      %p232 = pnand %p230, %p231
      %p233 = pneg %p232
      // Predicated region
      $region9: #{rankup_forward.1} parent=5 // pred_check
        _
      $region10: #{rankup_forward.1} parent=5 // pred_check_branch
        %235 = sbr.rel (%p232) target = $region12
      $region11: #{rankup_forward.1} parent=5 // pred_region
        %s236 = ssub.s32 %s18, 1
        // Predicated region
        $region13: #{rankup_forward.1} parent=11 // pred_check
          %p237 = pneg %p65
        $region14: #{rankup_forward.1} parent=11 // pred_check_branch
          %239 = sbr.rel (%p237) target = $region16
        $region15: #{rankup_forward.1} parent=11 // pred_region
          _
        $region16: #{rankup_forward.1} parent=11 // pred_fallthru
          _
        // Predicated region
        $region17: #{rankup_forward.1} parent=11 // pred_check
          %p240 = pneg %p86
        $region18: #{rankup_forward.1} parent=11 // pred_check_branch
          %242 = sbr.rel (%p240) target = $region20
        $region19: #{rankup_forward.1} parent=11 // pred_region
          _
        $region20: #{rankup_forward.1} parent=11 // pred_fallthru
          _
        // Predicated region
        $region21: #{rankup_forward.1} parent=11 // pred_check
          %p243 = pneg %p107
        $region22: #{rankup_forward.1} parent=11 // pred_check_branch
          %245 = sbr.rel (%p243) target = $region24
        $region23: #{rankup_forward.1} parent=11 // pred_region
          _
        $region24: #{rankup_forward.1} parent=11 // pred_fallthru
          _
        // Predicated region
        $region25: #{rankup_forward.1} parent=11 // pred_check
          %p246 = pneg %p128
        $region26: #{rankup_forward.1} parent=11 // pred_check_branch
          %248 = sbr.rel (%p246) target = $region28
        $region27: #{rankup_forward.1} parent=11 // pred_region
          _
        $region28: #{rankup_forward.1} parent=11 // pred_fallthru
          _
        // Predicated region
        $region29: #{rankup_forward.1} parent=11 // pred_check
          %p249 = pneg %p149
        $region30: #{rankup_forward.1} parent=11 // pred_check_branch
          %251 = sbr.rel (%p249) target = $region32
        $region31: #{rankup_forward.1} parent=11 // pred_region
          _
        $region32: #{rankup_forward.1} parent=11 // pred_fallthru
          _
        // Predicated region
        $region33: #{rankup_forward.1} parent=11 // pred_check
          %p252 = pneg %p170
        $region34: #{rankup_forward.1} parent=11 // pred_check_branch
          %254 = sbr.rel (%p252) target = $region36
        $region35: #{rankup_forward.1} parent=11 // pred_region
          _
        $region36: #{rankup_forward.1} parent=11 // pred_fallthru
          _
      $region12: #{rankup_forward.1} parent=5 // pred_fallthru
        _
      %p255 = scmp.lt.s32.totalorder %s18, 2
      // Predicated region
      $region37: #{rankup_forward.1} parent=5 // pred_check
        %p256 = pneg %p255
      $region38: #{rankup_forward.1} parent=5 // pred_check_branch
        %258 = sbr.rel (%p256) target = $region40
      $region39: #{rankup_forward.1} parent=5 // pred_region
        // Predicated region
        $region41: #{rankup_forward.1} parent=39 // pred_check
          %p259 = pneg %p38
        $region42: #{rankup_forward.1} parent=39 // pred_check_branch
          %261 = sbr.rel (%p259) target = $region44
        $region43: #{rankup_forward.1} parent=39 // pred_region
          %s262 = smul.u32 32, %s18
          %p263 = scmp.lt.s32.totalorder %s262, 63
          %s264 = scalar_select %p263, %s262, 63
          %s265 = smul.addr %s264, 4
          %s266 = scalar_lea.vmem %s0, %s265
          %s267 = smul.u32 32, %s18
        $region44: #{rankup_forward.1} parent=39 // pred_fallthru
          _
      $region40: #{rankup_forward.1} parent=5 // pred_fallthru
        _
      %p268 = scmp.le.s32.totalorder 1, %s18
      %p269 = scmp.lt.s32.totalorder %s18, 3
      %p270 = pnand %p268, %p269
      %p271 = pneg %p270
      // Predicated region
      $region45: #{rankup_forward.1} parent=5 // pred_check
        _
      $region46: #{rankup_forward.1} parent=5 // pred_check_branch
        %273 = sbr.rel (%p270) target = $region48
      $region47: #{rankup_forward.1} parent=5 // pred_region
        %s274 = ssub.s32 %s18, 1
        %s275 = smul.u32 32, %s23
        %p276 = scmp.lt.s32.totalorder %s275, 63
        %s277 = scalar_select %p276, %s275, 63
        %s278 = smul.addr %s277, 4
        %s279 = scalar_lea.vmem %s0, %s278
        %p280 = pneg %p44
        %p281 = pneg %p41
        %p282 = pneg %p65
        %p283 = pneg %p62
        %p284 = pneg %p86
        %p285 = pneg %p83
        %p286 = pneg %p107
        %p287 = pneg %p104
        %p288 = pneg %p128
        %p289 = pneg %p125
        %p290 = pneg %p149
        %p291 = pneg %p146
        %p292 = pneg %p170
        %p293 = pneg %p167
        %p294 = pneg %p196
        %p295 = pneg %p193
        %s296 = sand.u32 %s183, 1
        %s297 = scalar_lea.sflag [#allocation3], %s296
        %s298 = sand.u32 %s183, 1
        %s299 = smul.addr %s298, 128
        %s300 = scalar_lea.vmem [#allocation2], %s299
        %p301 = pneg %p222
        %p302 = pneg %p219
        %s303 = smul.u32 32, %s23
        %p304 = scmp.lt.s32.totalorder %s303, 63
        %s305 = scalar_select %p304, %s303, 63
        %s306 = smul.addr %s305, 4
        %s307 = scalar_lea.vmem %s8, %s306
        %s308 = smul.u32 32, %s23
        %p309 = scmp.lt.s32.totalorder %s308, 63
        %s310 = scalar_select %p309, %s308, 63
        %s311 = smul.addr %s310, 4
        %s312 = scalar_lea.vmem %s0, %s311
        %s313 = smul.u32 32, %s23
        %s314 = smul.u32 32, %s23
        %s315 = smul.u32 32, %s23
        %p316 = scmp.lt.s32.totalorder %s315, 63
        %s317 = scalar_select %p316, %s315, 63
        %s318 = smul.addr %s317, 4
        %s319 = scalar_lea.vmem %s8, %s318
        %s320 = smul.u32 32, %s23
        %v322 = vld [vmem:[%s312] sm:$0xf]
        %v323 = vld [vmem:[%s312 + $0x4] sm:$0xf]
        %v324 = vld [vmem:[%s312 + $0x8] sm:$0xf]
        %v325 = vld [vmem:[%s312 + $0xc] sm:$0xf]
        %v326 = vld [vmem:[%s312 + $0x10] sm:$0xf]
        %v327 = vld [vmem:[%s312 + $0x14] sm:$0xf]
        %v328 = vld [vmem:[%s312 + $0x18] sm:$0xf]
        %v329 = vld [vmem:[%s312 + $0x1c] sm:$0xf]
        %v330 = vld [vmem:[%s312 + $0x20] sm:$0xf]
        %v331 = vld [vmem:[%s312 + $0x24] sm:$0xf]
        %v332 = vld [vmem:[%s312 + $0x28] sm:$0xf]
        %v333 = vld [vmem:[%s312 + $0x2c] sm:$0xf]
        %v334 = vld [vmem:[%s312 + $0x30] sm:$0xf]
        %v335 = vld [vmem:[%s312 + $0x34] sm:$0xf]
        %v336 = vld [vmem:[%s312 + $0x38] sm:$0xf]
        %v337 = vld [vmem:[%s312 + $0x3c] sm:$0xf]
        %v338 = vld [vmem:[%s312 + $0x40] sm:$0xf]
        %v339 = vld [vmem:[%s312 + $0x44] sm:$0xf]
        %v340 = vld [vmem:[%s312 + $0x48] sm:$0xf]
        %v341 = vld [vmem:[%s312 + $0x4c] sm:$0xf]
        %v342 = vld [vmem:[%s312 + $0x50] sm:$0xf]
        %v343 = vld [vmem:[%s312 + $0x54] sm:$0xf]
        %v344 = vld [vmem:[%s312 + $0x58] sm:$0xf]
        %v345 = vld [vmem:[%s312 + $0x5c] sm:$0xf]
        %v346 = vld [vmem:[%s312 + $0x60] sm:$0xf]
        %v347 = vld [vmem:[%s312 + $0x64] sm:$0xf]
        %v348 = vld [vmem:[%s312 + $0x68] sm:$0xf]
        %v349 = vld [vmem:[%s312 + $0x6c] sm:$0xf]
        %v350 = vld [vmem:[%s312 + $0x70] sm:$0xf]
        %v351 = vld [vmem:[%s312 + $0x74] sm:$0xf]
        %v352 = vld [vmem:[%s312 + $0x78] sm:$0xf]
        %v353 = vld [vmem:[%s312 + $0x7c] sm:$0xf]
        %v354 = vld [vmem:[%s1] sm:$0xf]
        %v355 = vld [vmem:[%s1 + $0x4] sm:$0xf]
        %v356 = vld [vmem:[%s1 + $0x8] sm:$0xf]
        %v357 = vld [vmem:[%s1 + $0xc] sm:$0xf]
        %v358 = vld [vmem:[%s2] sm:$0x1]
        %v360 = vlaneseq
        %v361 = vshrl.u32 %v360, 7
        %v362 = vsub.s32 0, %v361
        %v363 = vrot.slane %v358, %v362
        %v397 = vunpack.c.l.b16 %v322
        %v398 = vunpack.c.l.b16 %v323
        %v399 = vunpack.c.l.b16 %v324
        %v400 = vunpack.c.l.b16 %v325
        %v401 = vunpack.c.l.b16 %v326
        %v402 = vunpack.c.l.b16 %v327
        %v403 = vunpack.c.l.b16 %v328
        %v404 = vunpack.c.l.b16 %v329
        %v405 = vunpack.c.l.b16 %v330
        %v406 = vunpack.c.l.b16 %v331
        %v407 = vunpack.c.l.b16 %v332
        %v408 = vunpack.c.l.b16 %v333
        %v409 = vunpack.c.l.b16 %v334
        %v410 = vunpack.c.l.b16 %v335
        %v411 = vunpack.c.l.b16 %v336
        %v412 = vunpack.c.l.b16 %v337
        %v413 = vunpack.c.l.b16 %v338
        %v414 = vunpack.c.l.b16 %v339
        %v415 = vunpack.c.l.b16 %v340
        %v416 = vunpack.c.l.b16 %v341
        %v417 = vunpack.c.l.b16 %v342
        %v418 = vunpack.c.l.b16 %v343
        %v419 = vunpack.c.l.b16 %v344
        %v420 = vunpack.c.l.b16 %v345
        %v421 = vunpack.c.l.b16 %v346
        %v422 = vunpack.c.l.b16 %v347
        %v423 = vunpack.c.l.b16 %v348
        %v424 = vunpack.c.l.b16 %v349
        %v425 = vunpack.c.l.b16 %v350
        %v426 = vunpack.c.l.b16 %v351
        %v427 = vunpack.c.l.b16 %v352
        %v428 = vunpack.c.l.b16 %v353
        %v429 = vpack.c.b16 %v398, %v397
        %v430 = vpack.c.b16 %v400, %v399
        %v431 = vpack.c.b16 %v402, %v401
        %v432 = vpack.c.b16 %v404, %v403
        %v433 = vpack.c.b16 %v406, %v405
        %v434 = vpack.c.b16 %v408, %v407
        %v435 = vpack.c.b16 %v410, %v409
        %v436 = vpack.c.b16 %v412, %v411
        %v437 = vpack.c.b16 %v414, %v413
        %v438 = vpack.c.b16 %v416, %v415
        %v439 = vpack.c.b16 %v418, %v417
        %v440 = vpack.c.b16 %v420, %v419
        %v441 = vpack.c.b16 %v422, %v421
        %v442 = vpack.c.b16 %v424, %v423
        %v443 = vpack.c.b16 %v426, %v425
        %v444 = vpack.c.b16 %v428, %v427
        %v449 = vunpack.c.l.b16 %v354
        %v450 = vunpack.c.l.b16 %v355
        %v451 = vunpack.c.l.b16 %v356
        %v452 = vunpack.c.l.b16 %v357
        %v453 = vpack.c.b16 %v450, %v449
        %v454 = vpack.c.b16 %v452, %v451
        %vm457 = vcmask 261120
        %v459 = vsel %vm457, %v429, 0
        %v462 = vsel %vm457, %v430, 0
        %v465 = vsel %vm457, %v431, 0
        %v468 = vsel %vm457, %v432, 0
        %v471 = vsel %vm457, %v433, 0
        %v474 = vsel %vm457, %v434, 0
        %v477 = vsel %vm457, %v435, 0
        %v480 = vsel %vm457, %v436, 0
        %v483 = vsel %vm457, %v437, 0
        %v486 = vsel %vm457, %v438, 0
        %v489 = vsel %vm457, %v439, 0
        %v492 = vsel %vm457, %v440, 0
        %v495 = vsel %vm457, %v441, 0
        %v498 = vsel %vm457, %v442, 0
        %v501 = vsel %vm457, %v443, 0
        %v504 = vsel %vm457, %v444, 0
        %506 = vmatprep.subr.bf16.mxu0 0
        %507 = vmatpush1.bf16.msra.mxu0 0
        %508 = vmatprep.subr.bf16.mxu0 0
        %509 = vmatpush1.bf16.msra.mxu0 0
        %510 = vmatprep.subr.bf16.mxu0 0
        %511 = vmatpush1.bf16.msra.mxu0 0
        %512 = vmatprep.subr.bf16.mxu0 0
        %513 = vmatpush1.bf16.msra.mxu0 0
        %514 = vmatprep.subr.bf16.mxu0 0
        %515 = vmatpush1.bf16.msra.mxu0 0
        %516 = vmatprep.subr.bf16.mxu0 0
        %517 = vmatpush1.bf16.msra.mxu0 0
        %518 = vmatprep.subr.bf16.mxu0 0
        %519 = vmatpush1.bf16.msra.mxu0 %v454
        %520 = vmatprep.subr.bf16.mxu0 0
        %521 = vmatpush1.bf16.msra.mxu0 %v453
        %522 = vmatprep.subr.bf16.mxu0 0
        %523 = vmatpush2.bf16.msra.mxu0 0
        %524 = vmatprep.subr.bf16.mxu0 0
        %525 = vmatpush2.bf16.msra.mxu0 0
        %526 = vmatprep.subr.bf16.mxu0 0
        %527 = vmatpush2.bf16.msra.mxu0 0
        %528 = vmatprep.subr.bf16.mxu0 0
        %529 = vmatpush2.bf16.msra.mxu0 0
        %530 = vmatprep.subr.bf16.mxu0 0
        %531 = vmatpush2.bf16.msra.mxu0 0
        %532 = vmatprep.subr.bf16.mxu0 0
        %533 = vmatpush2.bf16.msra.mxu0 0
        %534 = vmatprep.subr.bf16.mxu0 0
        %535 = vmatpush2.bf16.msra.mxu0 0
        %536 = vmatprep.subr.bf16.mxu0 0
        %537 = vmatpush2.bf16.msra.mxu0 0
        %538 = vmatprep.mubr.bf16.mxu0 0
        %539 = vmatmul.mubr.bf16.gmra.mxu0 %v459
        %v540 = vpop.f32.mrf.mxu0
        %v541 = vadd.f32 %v363, %v540
        %v542 = vpop.f32.mrf.mxu0
        %v543 = vpop.f32.mrf.mxu0
        %v544 = vadd.f32 %v363, %v543
        %v545 = vpop.f32.mrf.mxu0
        %546 = vmatprep.mubr.bf16.mxu0 0
        %547 = vmatmul.mubr.bf16.gmra.mxu0 %v462
        %v548 = vpop.f32.mrf.mxu0
        %v549 = vadd.f32 %v363, %v548
        %v550 = vpop.f32.mrf.mxu0
        %v551 = vpop.f32.mrf.mxu0
        %v552 = vadd.f32 %v363, %v551
        %v553 = vpop.f32.mrf.mxu0
        %554 = vmatprep.mubr.bf16.mxu0 0
        %555 = vmatmul.mubr.bf16.gmra.mxu0 %v465
        %v556 = vpop.f32.mrf.mxu0
        %v557 = vadd.f32 %v363, %v556
        %v558 = vpop.f32.mrf.mxu0
        %v559 = vpop.f32.mrf.mxu0
        %v560 = vadd.f32 %v363, %v559
        %v561 = vpop.f32.mrf.mxu0
        %562 = vmatprep.mubr.bf16.mxu0 0
        %563 = vmatmul.mubr.bf16.gmra.mxu0 %v468
        %v564 = vpop.f32.mrf.mxu0
        %v565 = vadd.f32 %v363, %v564
        %v566 = vpop.f32.mrf.mxu0
        %v567 = vpop.f32.mrf.mxu0
        %v568 = vadd.f32 %v363, %v567
        %v569 = vpop.f32.mrf.mxu0
        %570 = vmatprep.mubr.bf16.mxu0 0
        %571 = vmatmul.mubr.bf16.gmra.mxu0 %v471
        %v572 = vpop.f32.mrf.mxu0
        %v573 = vadd.f32 %v363, %v572
        %v574 = vpop.f32.mrf.mxu0
        %v575 = vpop.f32.mrf.mxu0
        %v576 = vadd.f32 %v363, %v575
        %v577 = vpop.f32.mrf.mxu0
        %578 = vmatprep.mubr.bf16.mxu0 0
        %579 = vmatmul.mubr.bf16.gmra.mxu0 %v474
        %v580 = vpop.f32.mrf.mxu0
        %v581 = vadd.f32 %v363, %v580
        %v582 = vpop.f32.mrf.mxu0
        %v583 = vpop.f32.mrf.mxu0
        %v584 = vadd.f32 %v363, %v583
        %v585 = vpop.f32.mrf.mxu0
        %586 = vmatprep.mubr.bf16.mxu0 0
        %587 = vmatmul.mubr.bf16.gmra.mxu0 %v477
        %v588 = vpop.f32.mrf.mxu0
        %v589 = vadd.f32 %v363, %v588
        %v590 = vpop.f32.mrf.mxu0
        %v591 = vpop.f32.mrf.mxu0
        %v592 = vadd.f32 %v363, %v591
        %v593 = vpop.f32.mrf.mxu0
        %594 = vmatprep.mubr.bf16.mxu0 0
        %595 = vmatmul.mubr.bf16.gmra.mxu0 %v480
        %v596 = vpop.f32.mrf.mxu0
        %v597 = vadd.f32 %v363, %v596
        %v598 = vpop.f32.mrf.mxu0
        %v599 = vpop.f32.mrf.mxu0
        %v600 = vadd.f32 %v363, %v599
        %v601 = vpop.f32.mrf.mxu0
        %602 = vmatprep.mubr.bf16.mxu0 0
        %603 = vmatmul.mubr.bf16.gmra.mxu0 %v483
        %v604 = vpop.f32.mrf.mxu0
        %v605 = vadd.f32 %v363, %v604
        %v606 = vpop.f32.mrf.mxu0
        %v607 = vpop.f32.mrf.mxu0
        %v608 = vadd.f32 %v363, %v607
        %v609 = vpop.f32.mrf.mxu0
        %610 = vmatprep.mubr.bf16.mxu0 0
        %611 = vmatmul.mubr.bf16.gmra.mxu0 %v486
        %v612 = vpop.f32.mrf.mxu0
        %v613 = vadd.f32 %v363, %v612
        %v614 = vpop.f32.mrf.mxu0
        %v615 = vpop.f32.mrf.mxu0
        %v616 = vadd.f32 %v363, %v615
        %v617 = vpop.f32.mrf.mxu0
        %618 = vmatprep.mubr.bf16.mxu0 0
        %619 = vmatmul.mubr.bf16.gmra.mxu0 %v489
        %v620 = vpop.f32.mrf.mxu0
        %v621 = vadd.f32 %v363, %v620
        %v622 = vpop.f32.mrf.mxu0
        %v623 = vpop.f32.mrf.mxu0
        %v624 = vadd.f32 %v363, %v623
        %v625 = vpop.f32.mrf.mxu0
        %626 = vmatprep.mubr.bf16.mxu0 0
        %627 = vmatmul.mubr.bf16.gmra.mxu0 %v492
        %v628 = vpop.f32.mrf.mxu0
        %v629 = vadd.f32 %v363, %v628
        %v630 = vpop.f32.mrf.mxu0
        %v631 = vpop.f32.mrf.mxu0
        %v632 = vadd.f32 %v363, %v631
        %v633 = vpop.f32.mrf.mxu0
        %634 = vmatprep.mubr.bf16.mxu0 0
        %635 = vmatmul.mubr.bf16.gmra.mxu0 %v495
        %v636 = vpop.f32.mrf.mxu0
        %v637 = vadd.f32 %v363, %v636
        %v638 = vpop.f32.mrf.mxu0
        %v639 = vpop.f32.mrf.mxu0
        %v640 = vadd.f32 %v363, %v639
        %v641 = vpop.f32.mrf.mxu0
        %642 = vmatprep.mubr.bf16.mxu0 0
        %643 = vmatmul.mubr.bf16.gmra.mxu0 %v498
        %v644 = vpop.f32.mrf.mxu0
        %v645 = vadd.f32 %v363, %v644
        %v646 = vpop.f32.mrf.mxu0
        %v647 = vpop.f32.mrf.mxu0
        %v648 = vadd.f32 %v363, %v647
        %v649 = vpop.f32.mrf.mxu0
        %650 = vmatprep.mubr.bf16.mxu0 0
        %651 = vmatmul.mubr.bf16.gmra.mxu0 %v501
        %v652 = vpop.f32.mrf.mxu0
        %v653 = vadd.f32 %v363, %v652
        %v654 = vpop.f32.mrf.mxu0
        %v655 = vpop.f32.mrf.mxu0
        %v656 = vadd.f32 %v363, %v655
        %v657 = vpop.f32.mrf.mxu0
        %658 = vmatprep.mubr.bf16.mxu0 0
        %659 = vmatmul.mubr.bf16.gmra.mxu0 %v504
        %v660 = vpop.f32.mrf.mxu0
        %v661 = vadd.f32 %v363, %v660
        %v662 = vpop.f32.mrf.mxu0
        %v663 = vpop.f32.mrf.mxu0
        %v664 = vadd.f32 %v363, %v663
        %v665 = vpop.f32.mrf.mxu0
        %666 = vdwg.mxu0
        %v667 = vmax.f32 %v541, 0.0
        %v668 = vmax.f32 %v544, 0.0
        %v669 = vmax.f32 %v549, 0.0
        %v670 = vmax.f32 %v552, 0.0
        %v671 = vmax.f32 %v557, 0.0
        %v672 = vmax.f32 %v560, 0.0
        %v673 = vmax.f32 %v565, 0.0
        %v674 = vmax.f32 %v568, 0.0
        %v675 = vmax.f32 %v573, 0.0
        %v676 = vmax.f32 %v576, 0.0
        %v677 = vmax.f32 %v581, 0.0
        %v678 = vmax.f32 %v584, 0.0
        %v679 = vmax.f32 %v589, 0.0
        %v680 = vmax.f32 %v592, 0.0
        %v681 = vmax.f32 %v597, 0.0
        %v682 = vmax.f32 %v600, 0.0
        %v683 = vmax.f32 %v605, 0.0
        %v684 = vmax.f32 %v608, 0.0
        %v685 = vmax.f32 %v613, 0.0
        %v686 = vmax.f32 %v616, 0.0
        %v687 = vmax.f32 %v621, 0.0
        %v688 = vmax.f32 %v624, 0.0
        %v689 = vmax.f32 %v629, 0.0
        %v690 = vmax.f32 %v632, 0.0
        %v691 = vmax.f32 %v637, 0.0
        %v692 = vmax.f32 %v640, 0.0
        %v693 = vmax.f32 %v645, 0.0
        %v694 = vmax.f32 %v648, 0.0
        %v695 = vmax.f32 %v653, 0.0
        %v696 = vmax.f32 %v656, 0.0
        %v697 = vmax.f32 %v661, 0.0
        %v698 = vmax.f32 %v664, 0.0
        %v699 = vpack.c.bf16 %v668, %v667
        %v700 = vpack.c.bf16 %v670, %v669
        %v701 = vpack.c.bf16 %v672, %v671
        %v702 = vpack.c.bf16 %v674, %v673
        %v703 = vpack.c.bf16 %v676, %v675
        %v704 = vpack.c.bf16 %v678, %v677
        %v705 = vpack.c.bf16 %v680, %v679
        %v706 = vpack.c.bf16 %v682, %v681
        %v707 = vpack.c.bf16 %v684, %v683
        %v708 = vpack.c.bf16 %v686, %v685
        %v709 = vpack.c.bf16 %v688, %v687
        %v710 = vpack.c.bf16 %v690, %v689
        %v711 = vpack.c.bf16 %v692, %v691
        %v712 = vpack.c.bf16 %v694, %v693
        %v713 = vpack.c.bf16 %v696, %v695
        %v714 = vpack.c.bf16 %v698, %v697
        %v715 = vld [vmem:[%s3] sm:$0xf]
        %v716 = vld [vmem:[%s3 + $0x4] sm:$0xf]
        %v717 = vld [vmem:[%s3 + $0x8] sm:$0xf]
        %v718 = vld [vmem:[%s3 + $0xc] sm:$0xf]
        %v719 = vld [vmem:[%s3 + $0x10] sm:$0xf]
        %v720 = vld [vmem:[%s3 + $0x14] sm:$0xf]
        %v721 = vld [vmem:[%s3 + $0x18] sm:$0xf]
        %v722 = vld [vmem:[%s3 + $0x1c] sm:$0xf]
        %v723 = vld [vmem:[%s3 + $0x20] sm:$0xf]
        %v724 = vld [vmem:[%s3 + $0x24] sm:$0xf]
        %v725 = vld [vmem:[%s3 + $0x28] sm:$0xf]
        %v726 = vld [vmem:[%s3 + $0x2c] sm:$0xf]
        %v727 = vld [vmem:[%s3 + $0x30] sm:$0xf]
        %v728 = vld [vmem:[%s3 + $0x34] sm:$0xf]
        %v729 = vld [vmem:[%s3 + $0x38] sm:$0xf]
        %v730 = vld [vmem:[%s3 + $0x3c] sm:$0xf]
        %v731 = vld [vmem:[%s4] sm:$0x1]
        %v733 = vlaneseq
        %v734 = vshrl.u32 %v733, 7
        %v735 = vsub.s32 0, %v734
        %v736 = vrot.slane %v731, %v735
        %v754 = vunpack.c.l.b16 %v715
        %v755 = vunpack.c.l.b16 %v716
        %v756 = vunpack.c.l.b16 %v717
        %v757 = vunpack.c.l.b16 %v718
        %v758 = vunpack.c.l.b16 %v719
        %v759 = vunpack.c.l.b16 %v720
        %v760 = vunpack.c.l.b16 %v721
        %v761 = vunpack.c.l.b16 %v722
        %v762 = vunpack.c.l.b16 %v723
        %v763 = vunpack.c.l.b16 %v724
        %v764 = vunpack.c.l.b16 %v725
        %v765 = vunpack.c.l.b16 %v726
        %v766 = vunpack.c.l.b16 %v727
        %v767 = vunpack.c.l.b16 %v728
        %v768 = vunpack.c.l.b16 %v729
        %v769 = vunpack.c.l.b16 %v730
        %v770 = vpack.c.b16 %v755, %v754
        %v771 = vpack.c.b16 %v757, %v756
        %v772 = vpack.c.b16 %v759, %v758
        %v773 = vpack.c.b16 %v761, %v760
        %v774 = vpack.c.b16 %v763, %v762
        %v775 = vpack.c.b16 %v765, %v764
        %v776 = vpack.c.b16 %v767, %v766
        %v777 = vpack.c.b16 %v769, %v768
        %786 = vmatprep.subr.bf16.mxu0 0
        %787 = vmatpush1.bf16.msra.mxu0 %v777
        %788 = vmatprep.subr.bf16.mxu0 0
        %789 = vmatpush1.bf16.msra.mxu0 %v776
        %790 = vmatprep.subr.bf16.mxu0 0
        %791 = vmatpush1.bf16.msra.mxu0 %v775
        %792 = vmatprep.subr.bf16.mxu0 0
        %793 = vmatpush1.bf16.msra.mxu0 %v774
        %794 = vmatprep.subr.bf16.mxu0 0
        %795 = vmatpush1.bf16.msra.mxu0 %v773
        %796 = vmatprep.subr.bf16.mxu0 0
        %797 = vmatpush1.bf16.msra.mxu0 %v772
        %798 = vmatprep.subr.bf16.mxu0 0
        %799 = vmatpush1.bf16.msra.mxu0 %v771
        %800 = vmatprep.subr.bf16.mxu0 0
        %801 = vmatpush1.bf16.msra.mxu0 %v770
        %802 = vmatprep.subr.bf16.mxu0 0
        %803 = vmatpush2.bf16.msra.mxu0 0
        %804 = vmatprep.subr.bf16.mxu0 0
        %805 = vmatpush2.bf16.msra.mxu0 0
        %806 = vmatprep.subr.bf16.mxu0 0
        %807 = vmatpush2.bf16.msra.mxu0 0
        %808 = vmatprep.subr.bf16.mxu0 0
        %809 = vmatpush2.bf16.msra.mxu0 0
        %810 = vmatprep.subr.bf16.mxu0 0
        %811 = vmatpush2.bf16.msra.mxu0 0
        %812 = vmatprep.subr.bf16.mxu0 0
        %813 = vmatpush2.bf16.msra.mxu0 0
        %814 = vmatprep.subr.bf16.mxu0 0
        %815 = vmatpush2.bf16.msra.mxu0 0
        %816 = vmatprep.subr.bf16.mxu0 0
        %817 = vmatpush2.bf16.msra.mxu0 0
        %818 = vmatprep.mubr.bf16.mxu0 0
        %819 = vmatmul.mubr.bf16.gmra.mxu0 %v699
        %v820 = vpop.f32.mrf.mxu0
        %v821 = vadd.f32 %v736, %v820
        %v822 = vpop.f32.mrf.mxu0
        %v823 = vpop.f32.mrf.mxu0
        %v824 = vadd.f32 %v736, %v823
        %v825 = vpop.f32.mrf.mxu0
        %826 = vmatprep.mubr.bf16.mxu0 0
        %827 = vmatmul.mubr.bf16.gmra.mxu0 %v700
        %v828 = vpop.f32.mrf.mxu0
        %v829 = vadd.f32 %v736, %v828
        %v830 = vpop.f32.mrf.mxu0
        %v831 = vpop.f32.mrf.mxu0
        %v832 = vadd.f32 %v736, %v831
        %v833 = vpop.f32.mrf.mxu0
        %834 = vmatprep.mubr.bf16.mxu0 0
        %835 = vmatmul.mubr.bf16.gmra.mxu0 %v701
        %v836 = vpop.f32.mrf.mxu0
        %v837 = vadd.f32 %v736, %v836
        %v838 = vpop.f32.mrf.mxu0
        %v839 = vpop.f32.mrf.mxu0
        %v840 = vadd.f32 %v736, %v839
        %v841 = vpop.f32.mrf.mxu0
        %842 = vmatprep.mubr.bf16.mxu0 0
        %843 = vmatmul.mubr.bf16.gmra.mxu0 %v702
        %v844 = vpop.f32.mrf.mxu0
        %v845 = vadd.f32 %v736, %v844
        %v846 = vpop.f32.mrf.mxu0
        %v847 = vpop.f32.mrf.mxu0
        %v848 = vadd.f32 %v736, %v847
        %v849 = vpop.f32.mrf.mxu0
        %850 = vmatprep.mubr.bf16.mxu0 0
        %851 = vmatmul.mubr.bf16.gmra.mxu0 %v703
        %v852 = vpop.f32.mrf.mxu0
        %v853 = vadd.f32 %v736, %v852
        %v854 = vpop.f32.mrf.mxu0
        %v855 = vpop.f32.mrf.mxu0
        %v856 = vadd.f32 %v736, %v855
        %v857 = vpop.f32.mrf.mxu0
        %858 = vmatprep.mubr.bf16.mxu0 0
        %859 = vmatmul.mubr.bf16.gmra.mxu0 %v704
        %v860 = vpop.f32.mrf.mxu0
        %v861 = vadd.f32 %v736, %v860
        %v862 = vpop.f32.mrf.mxu0
        %v863 = vpop.f32.mrf.mxu0
        %v864 = vadd.f32 %v736, %v863
        %v865 = vpop.f32.mrf.mxu0
        %866 = vmatprep.mubr.bf16.mxu0 0
        %867 = vmatmul.mubr.bf16.gmra.mxu0 %v705
        %v868 = vpop.f32.mrf.mxu0
        %v869 = vadd.f32 %v736, %v868
        %v870 = vpop.f32.mrf.mxu0
        %v871 = vpop.f32.mrf.mxu0
        %v872 = vadd.f32 %v736, %v871
        %v873 = vpop.f32.mrf.mxu0
        %874 = vmatprep.mubr.bf16.mxu0 0
        %875 = vmatmul.mubr.bf16.gmra.mxu0 %v706
        %v876 = vpop.f32.mrf.mxu0
        %v877 = vadd.f32 %v736, %v876
        %v878 = vpop.f32.mrf.mxu0
        %v879 = vpop.f32.mrf.mxu0
        %v880 = vadd.f32 %v736, %v879
        %v881 = vpop.f32.mrf.mxu0
        %882 = vmatprep.mubr.bf16.mxu0 0
        %883 = vmatmul.mubr.bf16.gmra.mxu0 %v707
        %v884 = vpop.f32.mrf.mxu0
        %v885 = vadd.f32 %v736, %v884
        %v886 = vpop.f32.mrf.mxu0
        %v887 = vpop.f32.mrf.mxu0
        %v888 = vadd.f32 %v736, %v887
        %v889 = vpop.f32.mrf.mxu0
        %890 = vmatprep.mubr.bf16.mxu0 0
        %891 = vmatmul.mubr.bf16.gmra.mxu0 %v708
        %v892 = vpop.f32.mrf.mxu0
        %v893 = vadd.f32 %v736, %v892
        %v894 = vpop.f32.mrf.mxu0
        %v895 = vpop.f32.mrf.mxu0
        %v896 = vadd.f32 %v736, %v895
        %v897 = vpop.f32.mrf.mxu0
        %898 = vmatprep.mubr.bf16.mxu0 0
        %899 = vmatmul.mubr.bf16.gmra.mxu0 %v709
        %v900 = vpop.f32.mrf.mxu0
        %v901 = vadd.f32 %v736, %v900
        %v902 = vpop.f32.mrf.mxu0
        %v903 = vpop.f32.mrf.mxu0
        %v904 = vadd.f32 %v736, %v903
        %v905 = vpop.f32.mrf.mxu0
        %906 = vmatprep.mubr.bf16.mxu0 0
        %907 = vmatmul.mubr.bf16.gmra.mxu0 %v710
        %v908 = vpop.f32.mrf.mxu0
        %v909 = vadd.f32 %v736, %v908
        %v910 = vpop.f32.mrf.mxu0
        %v911 = vpop.f32.mrf.mxu0
        %v912 = vadd.f32 %v736, %v911
        %v913 = vpop.f32.mrf.mxu0
        %914 = vmatprep.mubr.bf16.mxu0 0
        %915 = vmatmul.mubr.bf16.gmra.mxu0 %v711
        %v916 = vpop.f32.mrf.mxu0
        %v917 = vadd.f32 %v736, %v916
        %v918 = vpop.f32.mrf.mxu0
        %v919 = vpop.f32.mrf.mxu0
        %v920 = vadd.f32 %v736, %v919
        %v921 = vpop.f32.mrf.mxu0
        %922 = vmatprep.mubr.bf16.mxu0 0
        %923 = vmatmul.mubr.bf16.gmra.mxu0 %v712
        %v924 = vpop.f32.mrf.mxu0
        %v925 = vadd.f32 %v736, %v924
        %v926 = vpop.f32.mrf.mxu0
        %v927 = vpop.f32.mrf.mxu0
        %v928 = vadd.f32 %v736, %v927
        %v929 = vpop.f32.mrf.mxu0
        %930 = vmatprep.mubr.bf16.mxu0 0
        %931 = vmatmul.mubr.bf16.gmra.mxu0 %v713
        %v932 = vpop.f32.mrf.mxu0
        %v933 = vadd.f32 %v736, %v932
        %v934 = vpop.f32.mrf.mxu0
        %v935 = vpop.f32.mrf.mxu0
        %v936 = vadd.f32 %v736, %v935
        %v937 = vpop.f32.mrf.mxu0
        %938 = vmatprep.mubr.bf16.mxu0 0
        %939 = vmatmul.mubr.bf16.gmra.mxu0 %v714
        %v940 = vpop.f32.mrf.mxu0
        %v941 = vadd.f32 %v736, %v940
        %v942 = vpop.f32.mrf.mxu0
        %v943 = vpop.f32.mrf.mxu0
        %v944 = vadd.f32 %v736, %v943
        %v945 = vpop.f32.mrf.mxu0
        %946 = vdwg.mxu0
        %v947 = vmax.f32 %v821, 0.0
        %v948 = vmax.f32 %v824, 0.0
        %v949 = vmax.f32 %v829, 0.0
        %v950 = vmax.f32 %v832, 0.0
        %v951 = vmax.f32 %v837, 0.0
        %v952 = vmax.f32 %v840, 0.0
        %v953 = vmax.f32 %v845, 0.0
        %v954 = vmax.f32 %v848, 0.0
        %v955 = vmax.f32 %v853, 0.0
        %v956 = vmax.f32 %v856, 0.0
        %v957 = vmax.f32 %v861, 0.0
        %v958 = vmax.f32 %v864, 0.0
        %v959 = vmax.f32 %v869, 0.0
        %v960 = vmax.f32 %v872, 0.0
        %v961 = vmax.f32 %v877, 0.0
        %v962 = vmax.f32 %v880, 0.0
        %v963 = vmax.f32 %v885, 0.0
        %v964 = vmax.f32 %v888, 0.0
        %v965 = vmax.f32 %v893, 0.0
        %v966 = vmax.f32 %v896, 0.0
        %v967 = vmax.f32 %v901, 0.0
        %v968 = vmax.f32 %v904, 0.0
        %v969 = vmax.f32 %v909, 0.0
        %v970 = vmax.f32 %v912, 0.0
        %v971 = vmax.f32 %v917, 0.0
        %v972 = vmax.f32 %v920, 0.0
        %v973 = vmax.f32 %v925, 0.0
        %v974 = vmax.f32 %v928, 0.0
        %v975 = vmax.f32 %v933, 0.0
        %v976 = vmax.f32 %v936, 0.0
        %v977 = vmax.f32 %v941, 0.0
        %v978 = vmax.f32 %v944, 0.0
        %v979 = vpack.c.bf16 %v948, %v947
        %v980 = vpack.c.bf16 %v950, %v949
        %v981 = vpack.c.bf16 %v952, %v951
        %v982 = vpack.c.bf16 %v954, %v953
        %v983 = vpack.c.bf16 %v956, %v955
        %v984 = vpack.c.bf16 %v958, %v957
        %v985 = vpack.c.bf16 %v960, %v959
        %v986 = vpack.c.bf16 %v962, %v961
        %v987 = vpack.c.bf16 %v964, %v963
        %v988 = vpack.c.bf16 %v966, %v965
        %v989 = vpack.c.bf16 %v968, %v967
        %v990 = vpack.c.bf16 %v970, %v969
        %v991 = vpack.c.bf16 %v972, %v971
        %v992 = vpack.c.bf16 %v974, %v973
        %v993 = vpack.c.bf16 %v976, %v975
        %v994 = vpack.c.bf16 %v978, %v977
        %v1011 = vunpack.c.l.b16 %v979
        %v1012 = vunpack.c.h.b16 %v979
        %v1013 = vunpack.c.l.b16 %v980
        %v1014 = vunpack.c.h.b16 %v980
        %v1015 = vunpack.c.l.b16 %v981
        %v1016 = vunpack.c.h.b16 %v981
        %v1017 = vunpack.c.l.b16 %v982
        %v1018 = vunpack.c.h.b16 %v982
        %v1019 = vunpack.c.l.b16 %v983
        %v1020 = vunpack.c.h.b16 %v983
        %v1021 = vunpack.c.l.b16 %v984
        %v1022 = vunpack.c.h.b16 %v984
        %v1023 = vunpack.c.l.b16 %v985
        %v1024 = vunpack.c.h.b16 %v985
        %v1025 = vunpack.c.l.b16 %v986
        %v1026 = vunpack.c.h.b16 %v986
        %v1027 = vunpack.c.l.b16 %v987
        %v1028 = vunpack.c.h.b16 %v987
        %v1029 = vunpack.c.l.b16 %v988
        %v1030 = vunpack.c.h.b16 %v988
        %v1031 = vunpack.c.l.b16 %v989
        %v1032 = vunpack.c.h.b16 %v989
        %v1033 = vunpack.c.l.b16 %v990
        %v1034 = vunpack.c.h.b16 %v990
        %v1035 = vunpack.c.l.b16 %v991
        %v1036 = vunpack.c.h.b16 %v991
        %v1037 = vunpack.c.l.b16 %v992
        %v1038 = vunpack.c.h.b16 %v992
        %v1039 = vunpack.c.l.b16 %v993
        %v1040 = vunpack.c.h.b16 %v993
        %v1041 = vunpack.c.l.b16 %v994
        %v1042 = vunpack.c.h.b16 %v994
        %v1043 = vpack.c.b16 %v1011, %v1011
        %v1044 = vpack.c.b16 %v1012, %v1012
        %v1045 = vpack.c.b16 %v1013, %v1013
        %v1046 = vpack.c.b16 %v1014, %v1014
        %v1047 = vpack.c.b16 %v1015, %v1015
        %v1048 = vpack.c.b16 %v1016, %v1016
        %v1049 = vpack.c.b16 %v1017, %v1017
        %v1050 = vpack.c.b16 %v1018, %v1018
        %v1051 = vpack.c.b16 %v1019, %v1019
        %v1052 = vpack.c.b16 %v1020, %v1020
        %v1053 = vpack.c.b16 %v1021, %v1021
        %v1054 = vpack.c.b16 %v1022, %v1022
        %v1055 = vpack.c.b16 %v1023, %v1023
        %v1056 = vpack.c.b16 %v1024, %v1024
        %v1057 = vpack.c.b16 %v1025, %v1025
        %v1058 = vpack.c.b16 %v1026, %v1026
        %v1059 = vpack.c.b16 %v1027, %v1027
        %v1060 = vpack.c.b16 %v1028, %v1028
        %v1061 = vpack.c.b16 %v1029, %v1029
        %v1062 = vpack.c.b16 %v1030, %v1030
        %v1063 = vpack.c.b16 %v1031, %v1031
        %v1064 = vpack.c.b16 %v1032, %v1032
        %v1065 = vpack.c.b16 %v1033, %v1033
        %v1066 = vpack.c.b16 %v1034, %v1034
        %v1067 = vpack.c.b16 %v1035, %v1035
        %v1068 = vpack.c.b16 %v1036, %v1036
        %v1069 = vpack.c.b16 %v1037, %v1037
        %v1070 = vpack.c.b16 %v1038, %v1038
        %v1071 = vpack.c.b16 %v1039, %v1039
        %v1072 = vpack.c.b16 %v1040, %v1040
        %v1073 = vpack.c.b16 %v1041, %v1041
        %v1074 = vpack.c.b16 %v1042, %v1042
        %1107 = vst [vmem:[%s300] sm:$0xf] %v1043
        %1108 = vst [vmem:[%s300 + $0x4] sm:$0xf] %v1044
        %1109 = vst [vmem:[%s300 + $0x8] sm:$0xf] %v1045
        %1110 = vst [vmem:[%s300 + $0xc] sm:$0xf] %v1046
        %1111 = vst [vmem:[%s300 + $0x10] sm:$0xf] %v1047
        %1112 = vst [vmem:[%s300 + $0x14] sm:$0xf] %v1048
        %1113 = vst [vmem:[%s300 + $0x18] sm:$0xf] %v1049
        %1114 = vst [vmem:[%s300 + $0x1c] sm:$0xf] %v1050
        %1115 = vst [vmem:[%s300 + $0x20] sm:$0xf] %v1051
        %1116 = vst [vmem:[%s300 + $0x24] sm:$0xf] %v1052
        %1117 = vst [vmem:[%s300 + $0x28] sm:$0xf] %v1053
        %1118 = vst [vmem:[%s300 + $0x2c] sm:$0xf] %v1054
        %1119 = vst [vmem:[%s300 + $0x30] sm:$0xf] %v1055
        %1120 = vst [vmem:[%s300 + $0x34] sm:$0xf] %v1056
        %1121 = vst [vmem:[%s300 + $0x38] sm:$0xf] %v1057
        %1122 = vst [vmem:[%s300 + $0x3c] sm:$0xf] %v1058
        %1123 = vst [vmem:[%s300 + $0x40] sm:$0xf] %v1059
        %1124 = vst [vmem:[%s300 + $0x44] sm:$0xf] %v1060
        %1125 = vst [vmem:[%s300 + $0x48] sm:$0xf] %v1061
        %1126 = vst [vmem:[%s300 + $0x4c] sm:$0xf] %v1062
        %1127 = vst [vmem:[%s300 + $0x50] sm:$0xf] %v1063
        %1128 = vst [vmem:[%s300 + $0x54] sm:$0xf] %v1064
        %1129 = vst [vmem:[%s300 + $0x58] sm:$0xf] %v1065
        %1130 = vst [vmem:[%s300 + $0x5c] sm:$0xf] %v1066
        %1131 = vst [vmem:[%s300 + $0x60] sm:$0xf] %v1067
        %1132 = vst [vmem:[%s300 + $0x64] sm:$0xf] %v1068
        %1133 = vst [vmem:[%s300 + $0x68] sm:$0xf] %v1069
        %1134 = vst [vmem:[%s300 + $0x6c] sm:$0xf] %v1070
        %1135 = vst [vmem:[%s300 + $0x70] sm:$0xf] %v1071
        %1136 = vst [vmem:[%s300 + $0x74] sm:$0xf] %v1072
        %1137 = vst [vmem:[%s300 + $0x78] sm:$0xf] %v1073
        %1138 = vst [vmem:[%s300 + $0x7c] sm:$0xf] %v1074
        %v1139 = vld [vmem:[%s5] sm:$0xf]
        %v1140 = vld [vmem:[%s5 + $0x4] sm:$0xf]
        %v1141 = vld [vmem:[%s5 + $0x8] sm:$0xf]
        %v1142 = vld [vmem:[%s5 + $0xc] sm:$0xf]
        %v1143 = vld [vmem:[%s5 + $0x10] sm:$0xf]
        %v1144 = vld [vmem:[%s5 + $0x14] sm:$0xf]
        %v1145 = vld [vmem:[%s5 + $0x18] sm:$0xf]
        %v1146 = vld [vmem:[%s5 + $0x1c] sm:$0xf]
        %v1147 = vld [vmem:[%s5 + $0x20] sm:$0xf]
        %v1148 = vld [vmem:[%s5 + $0x24] sm:$0xf]
        %v1149 = vld [vmem:[%s5 + $0x28] sm:$0xf]
        %v1150 = vld [vmem:[%s5 + $0x2c] sm:$0xf]
        %v1151 = vld [vmem:[%s5 + $0x30] sm:$0xf]
        %v1152 = vld [vmem:[%s5 + $0x34] sm:$0xf]
        %v1153 = vld [vmem:[%s5 + $0x38] sm:$0xf]
        %v1154 = vld [vmem:[%s5 + $0x3c] sm:$0xf]
        %v1155 = vld [vmem:[%s6] sm:$0x1]
        %v1157 = vlaneseq
        %v1158 = vshrl.u32 %v1157, 7
        %v1159 = vsub.s32 0, %v1158
        %v1160 = vrot.slane %v1155, %v1159
        %v1178 = vunpack.c.l.b16 %v1139
        %v1179 = vunpack.c.l.b16 %v1140
        %v1180 = vunpack.c.l.b16 %v1141
        %v1181 = vunpack.c.l.b16 %v1142
        %v1182 = vunpack.c.l.b16 %v1143
        %v1183 = vunpack.c.l.b16 %v1144
        %v1184 = vunpack.c.l.b16 %v1145
        %v1185 = vunpack.c.l.b16 %v1146
        %v1186 = vunpack.c.l.b16 %v1147
        %v1187 = vunpack.c.l.b16 %v1148
        %v1188 = vunpack.c.l.b16 %v1149
        %v1189 = vunpack.c.l.b16 %v1150
        %v1190 = vunpack.c.l.b16 %v1151
        %v1191 = vunpack.c.l.b16 %v1152
        %v1192 = vunpack.c.l.b16 %v1153
        %v1193 = vunpack.c.l.b16 %v1154
        %v1194 = vpack.c.b16 %v1179, %v1178
        %v1195 = vpack.c.b16 %v1181, %v1180
        %v1196 = vpack.c.b16 %v1183, %v1182
        %v1197 = vpack.c.b16 %v1185, %v1184
        %v1198 = vpack.c.b16 %v1187, %v1186
        %v1199 = vpack.c.b16 %v1189, %v1188
        %v1200 = vpack.c.b16 %v1191, %v1190
        %v1201 = vpack.c.b16 %v1193, %v1192
        %1210 = vmatprep.subr.bf16.mxu0 0
        %1211 = vmatpush1.bf16.msra.mxu0 %v1201
        %1212 = vmatprep.subr.bf16.mxu0 0
        %1213 = vmatpush1.bf16.msra.mxu0 %v1200
        %1214 = vmatprep.subr.bf16.mxu0 0
        %1215 = vmatpush1.bf16.msra.mxu0 %v1199
        %1216 = vmatprep.subr.bf16.mxu0 0
        %1217 = vmatpush1.bf16.msra.mxu0 %v1198
        %1218 = vmatprep.subr.bf16.mxu0 0
        %1219 = vmatpush1.bf16.msra.mxu0 %v1197
        %1220 = vmatprep.subr.bf16.mxu0 0
        %1221 = vmatpush1.bf16.msra.mxu0 %v1196
        %1222 = vmatprep.subr.bf16.mxu0 0
        %1223 = vmatpush1.bf16.msra.mxu0 %v1195
        %1224 = vmatprep.subr.bf16.mxu0 0
        %1225 = vmatpush1.bf16.msra.mxu0 %v1194
        %1226 = vmatprep.subr.bf16.mxu0 0
        %1227 = vmatpush2.bf16.msra.mxu0 0
        %1228 = vmatprep.subr.bf16.mxu0 0
        %1229 = vmatpush2.bf16.msra.mxu0 0
        %1230 = vmatprep.subr.bf16.mxu0 0
        %1231 = vmatpush2.bf16.msra.mxu0 0
        %1232 = vmatprep.subr.bf16.mxu0 0
        %1233 = vmatpush2.bf16.msra.mxu0 0
        %1234 = vmatprep.subr.bf16.mxu0 0
        %1235 = vmatpush2.bf16.msra.mxu0 0
        %1236 = vmatprep.subr.bf16.mxu0 0
        %1237 = vmatpush2.bf16.msra.mxu0 0
        %1238 = vmatprep.subr.bf16.mxu0 0
        %1239 = vmatpush2.bf16.msra.mxu0 0
        %1240 = vmatprep.subr.bf16.mxu0 0
        %1241 = vmatpush2.bf16.msra.mxu0 0
        %1242 = vmatprep.mubr.bf16.mxu0 0
        %1243 = vmatmul.mubr.bf16.gmra.mxu0 %v979
        %v1244 = vpop.f32.mrf.mxu0
        %v1245 = vadd.f32 %v1160, %v1244
        %v1246 = vpop.f32.mrf.mxu0
        %v1247 = vpop.f32.mrf.mxu0
        %v1248 = vadd.f32 %v1160, %v1247
        %v1249 = vpop.f32.mrf.mxu0
        %1250 = vmatprep.mubr.bf16.mxu0 0
        %1251 = vmatmul.mubr.bf16.gmra.mxu0 %v980
        %v1252 = vpop.f32.mrf.mxu0
        %v1253 = vadd.f32 %v1160, %v1252
        %v1254 = vpop.f32.mrf.mxu0
        %v1255 = vpop.f32.mrf.mxu0
        %v1256 = vadd.f32 %v1160, %v1255
        %v1257 = vpop.f32.mrf.mxu0
        %1258 = vmatprep.mubr.bf16.mxu0 0
        %1259 = vmatmul.mubr.bf16.gmra.mxu0 %v981
        %v1260 = vpop.f32.mrf.mxu0
        %v1261 = vadd.f32 %v1160, %v1260
        %v1262 = vpop.f32.mrf.mxu0
        %v1263 = vpop.f32.mrf.mxu0
        %v1264 = vadd.f32 %v1160, %v1263
        %v1265 = vpop.f32.mrf.mxu0
        %1266 = vmatprep.mubr.bf16.mxu0 0
        %1267 = vmatmul.mubr.bf16.gmra.mxu0 %v982
        %v1268 = vpop.f32.mrf.mxu0
        %v1269 = vadd.f32 %v1160, %v1268
        %v1270 = vpop.f32.mrf.mxu0
        %v1271 = vpop.f32.mrf.mxu0
        %v1272 = vadd.f32 %v1160, %v1271
        %v1273 = vpop.f32.mrf.mxu0
        %1274 = vmatprep.mubr.bf16.mxu0 0
        %1275 = vmatmul.mubr.bf16.gmra.mxu0 %v983
        %v1276 = vpop.f32.mrf.mxu0
        %v1277 = vadd.f32 %v1160, %v1276
        %v1278 = vpop.f32.mrf.mxu0
        %v1279 = vpop.f32.mrf.mxu0
        %v1280 = vadd.f32 %v1160, %v1279
        %v1281 = vpop.f32.mrf.mxu0
        %1282 = vmatprep.mubr.bf16.mxu0 0
        %1283 = vmatmul.mubr.bf16.gmra.mxu0 %v984
        %v1284 = vpop.f32.mrf.mxu0
        %v1285 = vadd.f32 %v1160, %v1284
        %v1286 = vpop.f32.mrf.mxu0
        %v1287 = vpop.f32.mrf.mxu0
        %v1288 = vadd.f32 %v1160, %v1287
        %v1289 = vpop.f32.mrf.mxu0
        %1290 = vmatprep.mubr.bf16.mxu0 0
        %1291 = vmatmul.mubr.bf16.gmra.mxu0 %v985
        %v1292 = vpop.f32.mrf.mxu0
        %v1293 = vadd.f32 %v1160, %v1292
        %v1294 = vpop.f32.mrf.mxu0
        %v1295 = vpop.f32.mrf.mxu0
        %v1296 = vadd.f32 %v1160, %v1295
        %v1297 = vpop.f32.mrf.mxu0
        %1298 = vmatprep.mubr.bf16.mxu0 0
        %1299 = vmatmul.mubr.bf16.gmra.mxu0 %v986
        %v1300 = vpop.f32.mrf.mxu0
        %v1301 = vadd.f32 %v1160, %v1300
        %v1302 = vpop.f32.mrf.mxu0
        %v1303 = vpop.f32.mrf.mxu0
        %v1304 = vadd.f32 %v1160, %v1303
        %v1305 = vpop.f32.mrf.mxu0
        %1306 = vmatprep.mubr.bf16.mxu0 0
        %1307 = vmatmul.mubr.bf16.gmra.mxu0 %v987
        %v1308 = vpop.f32.mrf.mxu0
        %v1309 = vadd.f32 %v1160, %v1308
        %v1310 = vpop.f32.mrf.mxu0
        %v1311 = vpop.f32.mrf.mxu0
        %v1312 = vadd.f32 %v1160, %v1311
        %v1313 = vpop.f32.mrf.mxu0
        %1314 = vmatprep.mubr.bf16.mxu0 0
        %1315 = vmatmul.mubr.bf16.gmra.mxu0 %v988
        %v1316 = vpop.f32.mrf.mxu0
        %v1317 = vadd.f32 %v1160, %v1316
        %v1318 = vpop.f32.mrf.mxu0
        %v1319 = vpop.f32.mrf.mxu0
        %v1320 = vadd.f32 %v1160, %v1319
        %v1321 = vpop.f32.mrf.mxu0
        %1322 = vmatprep.mubr.bf16.mxu0 0
        %1323 = vmatmul.mubr.bf16.gmra.mxu0 %v989
        %v1324 = vpop.f32.mrf.mxu0
        %v1325 = vadd.f32 %v1160, %v1324
        %v1326 = vpop.f32.mrf.mxu0
        %v1327 = vpop.f32.mrf.mxu0
        %v1328 = vadd.f32 %v1160, %v1327
        %v1329 = vpop.f32.mrf.mxu0
        %1330 = vmatprep.mubr.bf16.mxu0 0
        %1331 = vmatmul.mubr.bf16.gmra.mxu0 %v990
        %v1332 = vpop.f32.mrf.mxu0
        %v1333 = vadd.f32 %v1160, %v1332
        %v1334 = vpop.f32.mrf.mxu0
        %v1335 = vpop.f32.mrf.mxu0
        %v1336 = vadd.f32 %v1160, %v1335
        %v1337 = vpop.f32.mrf.mxu0
        %1338 = vmatprep.mubr.bf16.mxu0 0
        %1339 = vmatmul.mubr.bf16.gmra.mxu0 %v991
        %v1340 = vpop.f32.mrf.mxu0
        %v1341 = vadd.f32 %v1160, %v1340
        %v1342 = vpop.f32.mrf.mxu0
        %v1343 = vpop.f32.mrf.mxu0
        %v1344 = vadd.f32 %v1160, %v1343
        %v1345 = vpop.f32.mrf.mxu0
        %1346 = vmatprep.mubr.bf16.mxu0 0
        %1347 = vmatmul.mubr.bf16.gmra.mxu0 %v992
        %v1348 = vpop.f32.mrf.mxu0
        %v1349 = vadd.f32 %v1160, %v1348
        %v1350 = vpop.f32.mrf.mxu0
        %v1351 = vpop.f32.mrf.mxu0
        %v1352 = vadd.f32 %v1160, %v1351
        %v1353 = vpop.f32.mrf.mxu0
        %1354 = vmatprep.mubr.bf16.mxu0 0
        %1355 = vmatmul.mubr.bf16.gmra.mxu0 %v993
        %v1356 = vpop.f32.mrf.mxu0
        %v1357 = vadd.f32 %v1160, %v1356
        %v1358 = vpop.f32.mrf.mxu0
        %v1359 = vpop.f32.mrf.mxu0
        %v1360 = vadd.f32 %v1160, %v1359
        %v1361 = vpop.f32.mrf.mxu0
        %1362 = vmatprep.mubr.bf16.mxu0 0
        %1363 = vmatmul.mubr.bf16.gmra.mxu0 %v994
        %v1364 = vpop.f32.mrf.mxu0
        %v1365 = vadd.f32 %v1160, %v1364
        %v1366 = vpop.f32.mrf.mxu0
        %v1367 = vpop.f32.mrf.mxu0
        %v1368 = vadd.f32 %v1160, %v1367
        %v1369 = vpop.f32.mrf.mxu0
        %1370 = vdwg.mxu0
        %v1371 = vpack.c.bf16 %v1248, %v1245
        %v1372 = vpack.c.bf16 %v1256, %v1253
        %v1373 = vpack.c.bf16 %v1264, %v1261
        %v1374 = vpack.c.bf16 %v1272, %v1269
        %v1375 = vpack.c.bf16 %v1280, %v1277
        %v1376 = vpack.c.bf16 %v1288, %v1285
        %v1377 = vpack.c.bf16 %v1296, %v1293
        %v1378 = vpack.c.bf16 %v1304, %v1301
        %v1379 = vpack.c.bf16 %v1312, %v1309
        %v1380 = vpack.c.bf16 %v1320, %v1317
        %v1381 = vpack.c.bf16 %v1328, %v1325
        %v1382 = vpack.c.bf16 %v1336, %v1333
        %v1383 = vpack.c.bf16 %v1344, %v1341
        %v1384 = vpack.c.bf16 %v1352, %v1349
        %v1385 = vpack.c.bf16 %v1360, %v1357
        %v1386 = vpack.c.bf16 %v1368, %v1365
        %v1403 = vunpack.c.l.b16 %v1371
        %v1404 = vunpack.c.h.b16 %v1371
        %v1405 = vunpack.c.l.b16 %v1372
        %v1406 = vunpack.c.h.b16 %v1372
        %v1407 = vunpack.c.l.b16 %v1373
        %v1408 = vunpack.c.h.b16 %v1373
        %v1409 = vunpack.c.l.b16 %v1374
        %v1410 = vunpack.c.h.b16 %v1374
        %v1411 = vunpack.c.l.b16 %v1375
        %v1412 = vunpack.c.h.b16 %v1375
        %v1413 = vunpack.c.l.b16 %v1376
        %v1414 = vunpack.c.h.b16 %v1376
        %v1415 = vunpack.c.l.b16 %v1377
        %v1416 = vunpack.c.h.b16 %v1377
        %v1417 = vunpack.c.l.b16 %v1378
        %v1418 = vunpack.c.h.b16 %v1378
        %v1419 = vunpack.c.l.b16 %v1379
        %v1420 = vunpack.c.h.b16 %v1379
        %v1421 = vunpack.c.l.b16 %v1380
        %v1422 = vunpack.c.h.b16 %v1380
        %v1423 = vunpack.c.l.b16 %v1381
        %v1424 = vunpack.c.h.b16 %v1381
        %v1425 = vunpack.c.l.b16 %v1382
        %v1426 = vunpack.c.h.b16 %v1382
        %v1427 = vunpack.c.l.b16 %v1383
        %v1428 = vunpack.c.h.b16 %v1383
        %v1429 = vunpack.c.l.b16 %v1384
        %v1430 = vunpack.c.h.b16 %v1384
        %v1431 = vunpack.c.l.b16 %v1385
        %v1432 = vunpack.c.h.b16 %v1385
        %v1433 = vunpack.c.l.b16 %v1386
        %v1434 = vunpack.c.h.b16 %v1386
        %v1435 = vpack.c.b16 %v1403, %v1403
        %v1436 = vpack.c.b16 %v1404, %v1404
        %v1437 = vpack.c.b16 %v1405, %v1405
        %v1438 = vpack.c.b16 %v1406, %v1406
        %v1439 = vpack.c.b16 %v1407, %v1407
        %v1440 = vpack.c.b16 %v1408, %v1408
        %v1441 = vpack.c.b16 %v1409, %v1409
        %v1442 = vpack.c.b16 %v1410, %v1410
        %v1443 = vpack.c.b16 %v1411, %v1411
        %v1444 = vpack.c.b16 %v1412, %v1412
        %v1445 = vpack.c.b16 %v1413, %v1413
        %v1446 = vpack.c.b16 %v1414, %v1414
        %v1447 = vpack.c.b16 %v1415, %v1415
        %v1448 = vpack.c.b16 %v1416, %v1416
        %v1449 = vpack.c.b16 %v1417, %v1417
        %v1450 = vpack.c.b16 %v1418, %v1418
        %v1451 = vpack.c.b16 %v1419, %v1419
        %v1452 = vpack.c.b16 %v1420, %v1420
        %v1453 = vpack.c.b16 %v1421, %v1421
        %v1454 = vpack.c.b16 %v1422, %v1422
        %v1455 = vpack.c.b16 %v1423, %v1423
        %v1456 = vpack.c.b16 %v1424, %v1424
        %v1457 = vpack.c.b16 %v1425, %v1425
        %v1458 = vpack.c.b16 %v1426, %v1426
        %v1459 = vpack.c.b16 %v1427, %v1427
        %v1460 = vpack.c.b16 %v1428, %v1428
        %v1461 = vpack.c.b16 %v1429, %v1429
        %v1462 = vpack.c.b16 %v1430, %v1430
        %v1463 = vpack.c.b16 %v1431, %v1431
        %v1464 = vpack.c.b16 %v1432, %v1432
        %v1465 = vpack.c.b16 %v1433, %v1433
        %v1466 = vpack.c.b16 %v1434, %v1434
        %1499 = vst [vmem:[%s319] sm:$0xf] %v1435
        %1500 = vst [vmem:[%s319 + $0x4] sm:$0xf] %v1436
        %1501 = vst [vmem:[%s319 + $0x8] sm:$0xf] %v1437
        %1502 = vst [vmem:[%s319 + $0xc] sm:$0xf] %v1438
        %1503 = vst [vmem:[%s319 + $0x10] sm:$0xf] %v1439
        %1504 = vst [vmem:[%s319 + $0x14] sm:$0xf] %v1440
        %1505 = vst [vmem:[%s319 + $0x18] sm:$0xf] %v1441
        %1506 = vst [vmem:[%s319 + $0x1c] sm:$0xf] %v1442
        %1507 = vst [vmem:[%s319 + $0x20] sm:$0xf] %v1443
        %1508 = vst [vmem:[%s319 + $0x24] sm:$0xf] %v1444
        %1509 = vst [vmem:[%s319 + $0x28] sm:$0xf] %v1445
        %1510 = vst [vmem:[%s319 + $0x2c] sm:$0xf] %v1446
        %1511 = vst [vmem:[%s319 + $0x30] sm:$0xf] %v1447
        %1512 = vst [vmem:[%s319 + $0x34] sm:$0xf] %v1448
        %1513 = vst [vmem:[%s319 + $0x38] sm:$0xf] %v1449
        %1514 = vst [vmem:[%s319 + $0x3c] sm:$0xf] %v1450
        %1515 = vst [vmem:[%s319 + $0x40] sm:$0xf] %v1451
        %1516 = vst [vmem:[%s319 + $0x44] sm:$0xf] %v1452
        %1517 = vst [vmem:[%s319 + $0x48] sm:$0xf] %v1453
        %1518 = vst [vmem:[%s319 + $0x4c] sm:$0xf] %v1454
        %1519 = vst [vmem:[%s319 + $0x50] sm:$0xf] %v1455
        %1520 = vst [vmem:[%s319 + $0x54] sm:$0xf] %v1456
        %1521 = vst [vmem:[%s319 + $0x58] sm:$0xf] %v1457
        %1522 = vst [vmem:[%s319 + $0x5c] sm:$0xf] %v1458
        %1523 = vst [vmem:[%s319 + $0x60] sm:$0xf] %v1459
        %1524 = vst [vmem:[%s319 + $0x64] sm:$0xf] %v1460
        %1525 = vst [vmem:[%s319 + $0x68] sm:$0xf] %v1461
        %1526 = vst [vmem:[%s319 + $0x6c] sm:$0xf] %v1462
        %1527 = vst [vmem:[%s319 + $0x70] sm:$0xf] %v1463
        %1528 = vst [vmem:[%s319 + $0x74] sm:$0xf] %v1464
        %1529 = vst [vmem:[%s319 + $0x78] sm:$0xf] %v1465
        %1530 = vst [vmem:[%s319 + $0x7c] sm:$0xf] %v1466
        %s1531 = sand.u32 %s183, 1
        %s1532 = scalar_lea.sflag [#allocation3], %s1531
        %s1533 = sand.u32 %s183, 1
        %s1534 = smul.addr %s1533, 128
        %s1535 = scalar_lea.vmem [#allocation2], %s1534
        %s1536 = smul.u32 32, %s23
        %p1537 = scmp.lt.s32.totalorder %s1536, 63
        %s1538 = scalar_select %p1537, %s1536, 63
        %s1539 = smul.addr %s1538, 4
        %s1540 = scalar_lea.vmem %s8, %s1539
        // Predicated region
        $region49: #{rankup_forward.1} parent=47 // pred_check
          %p1541 = pneg %p193
        $region50: #{rankup_forward.1} parent=47 // pred_check_branch
          %1543 = sbr.rel (%p1541) target = $region52
        $region51: #{rankup_forward.1} parent=47 // pred_region
          %s1544 = smul.u32 32, %s23
          %s1546 = ssub.s32 2048, 2048
          %1547 = vsyncadd %s1532, %s1546
          %s1548 = smul.addr %s1544, 64
          %s1549 = scalar_lea.hbm %s7, %s1548
          %s1550 = sshll.u32 %s1535, 4
          %s1551 = int_to_ptr.vmem [resolvable:$true] %s1550
          %1556 = dma.vmem_to_hbm [thread:$0]  %s1551, 2048, %s1549, %s1532, 64, 64, 4
        $region52: #{rankup_forward.1} parent=47 // pred_fallthru
          _
        // Predicated region
        $region53: #{rankup_forward.1} parent=47 // pred_check
          %p1557 = pneg %p219
        $region54: #{rankup_forward.1} parent=47 // pred_check_branch
          %1559 = sbr.rel (%p1557) target = $region56
        $region55: #{rankup_forward.1} parent=47 // pred_region
          %s1560 = smul.u32 32, %s23
        $region56: #{rankup_forward.1} parent=47 // pred_fallthru
          _
      $region48: #{rankup_forward.1} parent=5 // pred_fallthru
        _
      %p1561 = scmp.le.s32.totalorder 2, %s18
      // Predicated region
      $region57: #{rankup_forward.1} parent=5 // pred_check
        %p1562 = pneg %p1561
      $region58: #{rankup_forward.1} parent=5 // pred_check_branch
        %1564 = sbr.rel (%p1562) target = $region60
      $region59: #{rankup_forward.1} parent=5 // pred_region
        %s1565 = ssub.s32 %s18, 2
        // Predicated region
        $region61: #{rankup_forward.1} parent=59 // pred_check
          %p1566 = pneg %p199
        $region62: #{rankup_forward.1} parent=59 // pred_check_branch
          %1568 = sbr.rel (%p1566) target = $region64
        $region63: #{rankup_forward.1} parent=59 // pred_region
          %s1569 = sand.u32 %s184, 1
          %s1570 = scalar_lea.sflag [#allocation3], %s1569
          %s1571 = sand.u32 %s184, 1
          %s1572 = smul.addr %s1571, 128
          %s1573 = scalar_lea.vmem [#allocation2], %s1572
          %1574 = dma.done %s1570, 2048
        $region64: #{rankup_forward.1} parent=59 // pred_fallthru
          _
        // Predicated region
        $region65: #{rankup_forward.1} parent=59 // pred_check
          %p1575 = pneg %p225
        $region66: #{rankup_forward.1} parent=59 // pred_check_branch
          %1577 = sbr.rel (%p1575) target = $region68
        $region67: #{rankup_forward.1} parent=59 // pred_region
          %s1578 = smul.u32 32, %s24
          %p1579 = scmp.lt.s32.totalorder %s1578, 63
          %s1580 = scalar_select %p1579, %s1578, 63
          %s1581 = smul.addr %s1580, 4
          %s1582 = scalar_lea.vmem %s8, %s1581
        $region68: #{rankup_forward.1} parent=59 // pred_fallthru
          _
      $region60: #{rankup_forward.1} parent=5 // pred_fallthru
        _
    $region6: #{rankup_forward.1} parent=1 // loop_footer
      %s22 = sadd.s32 1, %s18
    $region7: #{rankup_forward.1} parent=1 // loop_footer_branch
      %17 = sbr.rel target = $region3
    $region8: #{rankup_forward.1} parent=1 // loop_exit
      _
    %1583 = vsyncpa [#allocation3], 1
    %s1584 = scalar_lea.sflag [#allocation3], 1
    %1585 = vsyncpa %s1584, 1

</llo_original>
